<compile_context>
chip_gen: v5e
topology: v5e:2x2
jax: 0.10.0
libtpu: 0.0.40
codegen_flags: <defaults>
</compile_context>

<pallas_src>
import functools

import jax
import jax.numpy as jnp
from jax.experimental import pallas as pl
from jax.experimental.pallas import tpu as pltpu

LOSS_NAMES = ("data", "partial_data", "smooth", "landmark", "normal",
              "neighbordistance")

_MAX_BLOCK_N = 512      # vertices per block (multiple of 128, lane-dense)


def _pick_block_n(n):
    """Largest multiple-of-128 divisor of n that is <= _MAX_BLOCK_N,
    falling back to the full extent when n is not 128-aligned."""
    if n % 128 != 0:
        return n
    bn = min(n, _MAX_BLOCK_N)
    while n % bn != 0:
        bn -= 128
    return bn


def _losses_kernel(mask_ref,    # VMEM (1, bn)  f32 : data mask (0/1)
                   pmask_ref,   # VMEM (1, bn)  f32 : partial-data mask (0/1)
                   pred_v_ref,  # VMEM (3B, bn)     : deformed template verts
                   targ_v_ref,  # VMEM (3B, bn)     : target verts
                   rest_v_ref,  # VMEM (3, bn)      : rest template verts
                   a_ref,       # VMEM (12, bn)     : per-vertex 3x4 transform
                   tn_ref,      # VMEM (3, bn)      : template normals
                   gn_ref,      # VMEM (3, bn)      : target normals
                   lm_p_ref,    # VMEM (3B, L)      : predicted landmarks
                   lm_t_ref,    # VMEM (3B, L)      : target landmarks
                   out_ref,     # SMEM (8,) f32     : 6 unweighted losses + pad
                   acc_ref,     # SMEM (8,) f32     : running partial sums
                   *, n_total, batch):
    step = pl.program_id(0)

    @pl.when(step == 0)
    def _init():
        for i in range(8):
            acc_ref[i] = jnp.float32(0.0)
            out_ref[i] = jnp.float32(0.0)

    mask = mask_ref[...]                                 # (1, bn)
    pmask = pmask_ref[...]
    pv = pred_v_ref[...].astype(jnp.float32)             # (3B, bn)
    tv = targ_v_ref[...].astype(jnp.float32)

    # --- data / partial_data: one shared diff^2, two masked sums ------------
    diff = pv - tv
    diff2 = diff * diff
    col2 = jnp.sum(diff2, axis=0, keepdims=True)         # (1, bn)
    acc_ref[0] = acc_ref[0] + jnp.sum(col2 * mask)
    acc_ref[1] = acc_ref[1] + jnp.sum(col2 * pmask)
    acc_ref[2] = acc_ref[2] + jnp.sum(mask)
    acc_ref[3] = acc_ref[3] + jnp.sum(pmask)

    # --- smooth: difference of neighboring per-vertex transforms ------------
    a = a_ref[...].astype(jnp.float32)                   # (12, bn)
    da = a - pltpu.roll(a, shift=1, axis=1)
    acc_ref[4] = acc_ref[4] + jnp.sum(da * da)

    # --- normal: 1 - cos, masked (component-wise dot, no size-3 reduce) -----
    tn = tn_ref[...].astype(jnp.float32)                 # (3, bn)
    gn = gn_ref[...].astype(jnp.float32)
    cos = (tn[0:1, :] * gn[0:1, :] + tn[1:2, :] * gn[1:2, :]
           + tn[2:3, :] * gn[2:3, :])                    # (1, bn)
    acc_ref[5] = acc_ref[5] + jnp.sum((1.0 - cos) * mask)

    # --- neighbordistance: preserve edge lengths vs rest mesh ---------------
    rv = rest_v_ref[...].astype(jnp.float32)             # (3, bn)
    er = rv - pltpu.roll(rv, shift=1, axis=1)
    d_rest = jnp.sqrt(er[0:1, :] ** 2 + er[1:2, :] ** 2 + er[2:3, :] ** 2
                      + 1e-12)                           # (1, bn)
    ed = pv - pltpu.roll(pv, shift=1, axis=1)            # (3B, bn)
    s_nbr = jnp.float32(0.0)
    for b in range(batch):                               # static unroll, B small
        ex = ed[3 * b:3 * b + 1, :]
        ey = ed[3 * b + 1:3 * b + 2, :]
        ez = ed[3 * b + 2:3 * b + 3, :]
        d_def = jnp.sqrt(ex * ex + ey * ey + ez * ez + 1e-12)
        dd = d_def - d_rest
        s_nbr = s_nbr + jnp.sum(dd * dd)
    acc_ref[6] = acc_ref[6] + s_nbr

    # --- finalize: normalize accumulated sums into the 6 unweighted losses --
    @pl.when(step == pl.num_programs(0) - 1)
    def _finalize():
        n_mask = jnp.maximum(acc_ref[2], 1.0)            # guard empty masks
        n_pmask = jnp.maximum(acc_ref[3], 1.0)
        bf = jnp.float32(batch)
        nf = jnp.float32(n_total)
        lm_d = (lm_p_ref[...].astype(jnp.float32)
                - lm_t_ref[...].astype(jnp.float32))
        lm_cnt = jnp.float32(lm_d.shape[0] * lm_d.shape[1])
        out_ref[0] = acc_ref[0] / (bf * 3.0 * n_mask)    # data
        out_ref[1] = acc_ref[1] / (bf * 3.0 * n_pmask)   # partial_data
        out_ref[2] = acc_ref[4] / (12.0 * nf)            # smooth
        out_ref[3] = jnp.sum(lm_d * lm_d) / lm_cnt       # landmark
        out_ref[4] = acc_ref[5] / n_mask                 # normal
        out_ref[5] = acc_ref[6] / (bf * nf)              # neighbordistance


@jax.jit
def combined_loss(loss_weights, mask, pmask, pred_v, targ_v, rest_v, A,
                  t_normals, g_normals, lm_pred, lm_targ):
    """Returns (total_loss, per_loss_dict); per-loss values are the weighted
    terms the torch LossTracker would record."""
    B, N, _ = pred_v.shape
    L = lm_pred.shape[1]

    # Lane-dense layout: vertex dim -> lanes, channel dims -> sublanes.
    pv = pred_v.transpose(0, 2, 1).reshape(B * 3, N)
    tv = targ_v.transpose(0, 2, 1).reshape(B * 3, N)
    rv = rest_v.T                                        # (3, N)
    af = A.reshape(N, 12).T                              # (12, N)
    tn = t_normals.T
    gn = g_normals.T
    lp = lm_pred.transpose(0, 2, 1).reshape(B * 3, L)
    lt = lm_targ.transpose(0, 2, 1).reshape(B * 3, L)
    mask_f = mask.astype(jnp.float32).reshape(1, N)
    pmask_f = pmask.astype(jnp.float32).reshape(1, N)

    bn = _pick_block_n(N)
    grid = (N // bn,)

    def tiled(rows):
        return pl.BlockSpec((rows, bn), lambda i: (0, i))

    def whole(rows, cols):
        return pl.BlockSpec((rows, cols), lambda i: (0, 0))

    out = pl.pallas_call(
        functools.partial(_losses_kernel, n_total=N, batch=B),
        out_shape=jax.ShapeDtypeStruct((8,), jnp.float32),
        grid=grid,
        in_specs=[tiled(1), tiled(1),                    # masks
                  tiled(B * 3), tiled(B * 3),            # pred_v, targ_v
                  tiled(3), tiled(12),                   # rest_v, A
                  tiled(3), tiled(3),                    # normals
                  whole(B * 3, L), whole(B * 3, L)],     # landmarks
        out_specs=pl.BlockSpec(memory_space=pltpu.MemorySpace.SMEM),
        scratch_shapes=[pltpu.SMEM((8,), jnp.float32)],
        compiler_params=pltpu.CompilerParams(
            dimension_semantics=("arbitrary",)),
    )(mask_f, pmask_f, pv, tv, rv, af, tn, gn, lp, lt)

    per_loss = {name: loss_weights[name] * out[i]
                for i, name in enumerate(LOSS_NAMES)}
    total = jnp.sum(jnp.stack(list(per_loss.values())))
    return total, per_loss


if __name__ == "__main__":
    key = jax.random.PRNGKey(0)
    B, N, L = 2, 1024, 8        # small mesh; N multiple of 128 -> 2 grid blocks

    # current_loss_weights at iteration 0
    loss_weights = {
        "data": 1.0, "partial_data": 0.5, "smooth": 0.1,
        "landmark": 2.0, "normal": 0.25, "neighbordistance": 0.05,
    }

    keys = jax.random.split(key, 8)
    rest_v = jax.random.normal(keys[0], (N, 3), dtype=jnp.float32)
    pred_v = rest_v[None] + 0.01 * jax.random.normal(
        keys[1], (B, N, 3), dtype=jnp.float32)           # deformed template
    targ_v = rest_v[None] + 0.01 * jax.random.normal(
        keys[2], (B, N, 3), dtype=jnp.float32)           # scan / target
    A = (jnp.tile(jnp.eye(3, 4, dtype=jnp.float32)[None], (N, 1, 1))
         + 0.01 * jax.random.normal(keys[3], (N, 3, 4), dtype=jnp.float32))

    def _unit(x):
        return x / jnp.linalg.norm(x, axis=-1, keepdims=True)

    t_normals = _unit(jax.random.normal(keys[4], (N, 3), dtype=jnp.float32))
    g_normals = _unit(t_normals + 0.05 * jax.random.normal(
        keys[5], (N, 3), dtype=jnp.float32))
    lm_pred = jax.random.normal(keys[6], (B, L, 3), dtype=jnp.float32)
    lm_targ = lm_pred + 0.02 * jax.random.normal(keys[7], (B, L, 3),
                                                 dtype=jnp.float32)

    # bf16 inputs halve HBM traffic; the kernel casts to f32 and accumulates
    # in f32 (safe on v5e, cheap cast on v6e/v7x).
    to_bf16 = lambda x: x.astype(jnp.bfloat16)
    pred_v, targ_v, rest_v, A = map(to_bf16, (pred_v, targ_v, rest_v, A))
    t_normals, g_normals = map(to_bf16, (t_normals, g_normals))
    lm_pred, lm_targ = map(to_bf16, (lm_pred, lm_targ))

    mask = (jnp.arange(N) % 4) != 0          # data-loss vertex mask
    pmask = jnp.arange(N) < (N // 2)         # partial-data visibility mask

    total, per_loss = combined_loss(loss_weights, mask, pmask, pred_v, targ_v,
                                    rest_v, A, t_normals, g_normals,
                                    lm_pred, lm_targ)
    total = jax.block_until_ready(total)
    per_loss = jax.block_until_ready(per_loss)
    assert jnp.isfinite(total)
    print("KERNEL_OK")
</pallas_src>

<mosaic_0001>
module attributes {stable_mosaic.version = 11 : i64} {
  func.func @_losses_kernel(%arg0: i32, %arg1: memref<1x512xf32, #tpu.memory_space<vmem>>, %arg2: memref<1x512xf32, #tpu.memory_space<vmem>>, %arg3: memref<6x512xbf16, #tpu.memory_space<vmem>>, %arg4: memref<6x512xbf16, #tpu.memory_space<vmem>>, %arg5: memref<3x512xbf16, #tpu.memory_space<vmem>>, %arg6: memref<12x512xbf16, #tpu.memory_space<vmem>>, %arg7: memref<3x512xbf16, #tpu.memory_space<vmem>>, %arg8: memref<3x512xbf16, #tpu.memory_space<vmem>>, %arg9: memref<6x8xbf16, #tpu.memory_space<vmem>>, %arg10: memref<6x8xbf16, #tpu.memory_space<vmem>>, %arg11: memref<8xf32, #tpu.memory_space<smem>>, %arg12: memref<8xf32, #tpu.memory_space<smem>>) attributes {dimension_semantics = [#tpu.dimension_semantics<arbitrary>], iteration_bounds = array<i64: 2>, scalar_prefetch = 0 : i64, scratch_operands = 1 : i64, tpu.core_type = #tpu.core_type<tc>, window_params = [{transform_indices = @transform_0, window_bounds = array<i64: 1, 512>}, {transform_indices = @transform_1, window_bounds = array<i64: 1, 512>}, {transform_indices = @transform_2, window_bounds = array<i64: 6, 512>}, {transform_indices = @transform_3, window_bounds = array<i64: 6, 512>}, {transform_indices = @transform_4, window_bounds = array<i64: 3, 512>}, {transform_indices = @transform_5, window_bounds = array<i64: 12, 512>}, {transform_indices = @transform_6, window_bounds = array<i64: 3, 512>}, {transform_indices = @transform_7, window_bounds = array<i64: 3, 512>}, {pipeline_mode = #tpu.pipeline_mode<synchronous>, transform_indices = @transform_8, window_bounds = array<i64: 6, 8>}, {pipeline_mode = #tpu.pipeline_mode<synchronous>, transform_indices = @transform_9, window_bounds = array<i64: 6, 8>}, {transform_indices = @transform_10, window_bounds = array<i64: 8>}]} {
    %c0_i32 = arith.constant 0 : i32
    %0 = arith.cmpi eq, %arg0, %c0_i32 : i32
    %1 = arith.extui %0 : i1 to i32
    %c0_i32_0 = arith.constant 0 : i32
    %2 = arith.cmpi ne, %1, %c0_i32_0 : i32
    scf.if %2 {
      %cst_41 = arith.constant 0.000000e+00 : f32
      %c0_42 = arith.constant 0 : index
      %139 = memref.load %arg12[%c0_42] : memref<8xf32, #tpu.memory_space<smem>>
      memref.store %cst_41, %arg12[%c0_42] : memref<8xf32, #tpu.memory_space<smem>>
      %cst_43 = arith.constant 0.000000e+00 : f32
      %c0_44 = arith.constant 0 : index
      %140 = memref.load %arg11[%c0_44] : memref<8xf32, #tpu.memory_space<smem>>
      memref.store %cst_43, %arg11[%c0_44] : memref<8xf32, #tpu.memory_space<smem>>
      %cst_45 = arith.constant 0.000000e+00 : f32
      %c1_46 = arith.constant 1 : index
      %141 = memref.load %arg12[%c1_46] : memref<8xf32, #tpu.memory_space<smem>>
      memref.store %cst_45, %arg12[%c1_46] : memref<8xf32, #tpu.memory_space<smem>>
      %cst_47 = arith.constant 0.000000e+00 : f32
      %c1_48 = arith.constant 1 : index
      %142 = memref.load %arg11[%c1_48] : memref<8xf32, #tpu.memory_space<smem>>
      memref.store %cst_47, %arg11[%c1_48] : memref<8xf32, #tpu.memory_space<smem>>
      %cst_49 = arith.constant 0.000000e+00 : f32
      %c2_50 = arith.constant 2 : index
      %143 = memref.load %arg12[%c2_50] : memref<8xf32, #tpu.memory_space<smem>>
      memref.store %cst_49, %arg12[%c2_50] : memref<8xf32, #tpu.memory_space<smem>>
      %cst_51 = arith.constant 0.000000e+00 : f32
      %c2_52 = arith.constant 2 : index
      %144 = memref.load %arg11[%c2_52] : memref<8xf32, #tpu.memory_space<smem>>
      memref.store %cst_51, %arg11[%c2_52] : memref<8xf32, #tpu.memory_space<smem>>
      %cst_53 = arith.constant 0.000000e+00 : f32
      %c3_54 = arith.constant 3 : index
      %145 = memref.load %arg12[%c3_54] : memref<8xf32, #tpu.memory_space<smem>>
      memref.store %cst_53, %arg12[%c3_54] : memref<8xf32, #tpu.memory_space<smem>>
      %cst_55 = arith.constant 0.000000e+00 : f32
      %c3_56 = arith.constant 3 : index
      %146 = memref.load %arg11[%c3_56] : memref<8xf32, #tpu.memory_space<smem>>
      memref.store %cst_55, %arg11[%c3_56] : memref<8xf32, #tpu.memory_space<smem>>
      %cst_57 = arith.constant 0.000000e+00 : f32
      %c4_58 = arith.constant 4 : index
      %147 = memref.load %arg12[%c4_58] : memref<8xf32, #tpu.memory_space<smem>>
      memref.store %cst_57, %arg12[%c4_58] : memref<8xf32, #tpu.memory_space<smem>>
      %cst_59 = arith.constant 0.000000e+00 : f32
      %c4_60 = arith.constant 4 : index
      %148 = memref.load %arg11[%c4_60] : memref<8xf32, #tpu.memory_space<smem>>
      memref.store %cst_59, %arg11[%c4_60] : memref<8xf32, #tpu.memory_space<smem>>
      %cst_61 = arith.constant 0.000000e+00 : f32
      %c5_62 = arith.constant 5 : index
      %149 = memref.load %arg12[%c5_62] : memref<8xf32, #tpu.memory_space<smem>>
      memref.store %cst_61, %arg12[%c5_62] : memref<8xf32, #tpu.memory_space<smem>>
      %cst_63 = arith.constant 0.000000e+00 : f32
      %c5_64 = arith.constant 5 : index
      %150 = memref.load %arg11[%c5_64] : memref<8xf32, #tpu.memory_space<smem>>
      memref.store %cst_63, %arg11[%c5_64] : memref<8xf32, #tpu.memory_space<smem>>
      %cst_65 = arith.constant 0.000000e+00 : f32
      %c6_66 = arith.constant 6 : index
      %151 = memref.load %arg12[%c6_66] : memref<8xf32, #tpu.memory_space<smem>>
      memref.store %cst_65, %arg12[%c6_66] : memref<8xf32, #tpu.memory_space<smem>>
      %cst_67 = arith.constant 0.000000e+00 : f32
      %c6_68 = arith.constant 6 : index
      %152 = memref.load %arg11[%c6_68] : memref<8xf32, #tpu.memory_space<smem>>
      memref.store %cst_67, %arg11[%c6_68] : memref<8xf32, #tpu.memory_space<smem>>
      %cst_69 = arith.constant 0.000000e+00 : f32
      %c7 = arith.constant 7 : index
      %153 = memref.load %arg12[%c7] : memref<8xf32, #tpu.memory_space<smem>>
      memref.store %cst_69, %arg12[%c7] : memref<8xf32, #tpu.memory_space<smem>>
      %cst_70 = arith.constant 0.000000e+00 : f32
      %c7_71 = arith.constant 7 : index
      %154 = memref.load %arg11[%c7_71] : memref<8xf32, #tpu.memory_space<smem>>
      memref.store %cst_70, %arg11[%c7_71] : memref<8xf32, #tpu.memory_space<smem>>
    } else {
    }
    %c0 = arith.constant 0 : index
    %c0_1 = arith.constant 0 : index
    %3 = vector.load %arg1[%c0, %c0_1] : memref<1x512xf32, #tpu.memory_space<vmem>>, vector<1x512xf32>
    %c0_2 = arith.constant 0 : index
    %c0_3 = arith.constant 0 : index
    %4 = vector.load %arg2[%c0_2, %c0_3] : memref<1x512xf32, #tpu.memory_space<vmem>>, vector<1x512xf32>
    %c0_4 = arith.constant 0 : index
    %c0_5 = arith.constant 0 : index
    %5 = vector.load %arg3[%c0_4, %c0_5] : memref<6x512xbf16, #tpu.memory_space<vmem>>, vector<6x512xbf16>
    %6 = arith.extf %5 : vector<6x512xbf16> to vector<6x512xf32>
    %c0_6 = arith.constant 0 : index
    %c0_7 = arith.constant 0 : index
    %7 = vector.load %arg4[%c0_6, %c0_7] : memref<6x512xbf16, #tpu.memory_space<vmem>>, vector<6x512xbf16>
    %8 = arith.extf %7 : vector<6x512xbf16> to vector<6x512xf32>
    %9 = arith.subf %6, %8 : vector<6x512xf32>
    %10 = arith.mulf %9, %9 : vector<6x512xf32>
    %cst = arith.constant dense<0.000000e+00> : vector<512xf32>
    %11 = vector.multi_reduction <add>, %10, %cst [0] : vector<6x512xf32> to vector<512xf32>
    %12 = vector.shape_cast %11 : vector<512xf32> to vector<1x512xf32>
    %c0_8 = arith.constant 0 : index
    %13 = memref.load %arg12[%c0_8] : memref<8xf32, #tpu.memory_space<smem>>
    %14 = arith.mulf %12, %3 : vector<1x512xf32>
    %15 = vector.shape_cast %14 : vector<1x512xf32> to vector<1x1x512xf32>
    %cst_9 = arith.constant dense<0.000000e+00> : vector<1xf32>
    %16 = vector.multi_reduction <add>, %15, %cst_9 [1, 2] : vector<1x1x512xf32> to vector<1xf32>
    %17 = vector.shape_cast %16 : vector<1xf32> to vector<1x1x1xf32>
    %18 = vector.extract %17[0, 0, 0] : f32 from vector<1x1x1xf32>
    %19 = arith.addf %13, %18 : f32
    %c0_10 = arith.constant 0 : index
    %20 = memref.load %arg12[%c0_10] : memref<8xf32, #tpu.memory_space<smem>>
    memref.store %19, %arg12[%c0_10] : memref<8xf32, #tpu.memory_space<smem>>
    %c1 = arith.constant 1 : index
    %21 = memref.load %arg12[%c1] : memref<8xf32, #tpu.memory_space<smem>>
    %22 = arith.mulf %12, %4 : vector<1x512xf32>
    %23 = vector.shape_cast %22 : vector<1x512xf32> to vector<1x1x512xf32>
    %cst_11 = arith.constant dense<0.000000e+00> : vector<1xf32>
    %24 = vector.multi_reduction <add>, %23, %cst_11 [1, 2] : vector<1x1x512xf32> to vector<1xf32>
    %25 = vector.shape_cast %24 : vector<1xf32> to vector<1x1x1xf32>
    %26 = vector.extract %25[0, 0, 0] : f32 from vector<1x1x1xf32>
    %27 = arith.addf %21, %26 : f32
    %c1_12 = arith.constant 1 : index
    %28 = memref.load %arg12[%c1_12] : memref<8xf32, #tpu.memory_space<smem>>
    memref.store %27, %arg12[%c1_12] : memref<8xf32, #tpu.memory_space<smem>>
    %c2 = arith.constant 2 : index
    %29 = memref.load %arg12[%c2] : memref<8xf32, #tpu.memory_space<smem>>
    %30 = vector.shape_cast %3 : vector<1x512xf32> to vector<1x1x512xf32>
    %cst_13 = arith.constant dense<0.000000e+00> : vector<1xf32>
    %31 = vector.multi_reduction <add>, %30, %cst_13 [1, 2] : vector<1x1x512xf32> to vector<1xf32>
    %32 = vector.shape_cast %31 : vector<1xf32> to vector<1x1x1xf32>
    %33 = vector.extract %32[0, 0, 0] : f32 from vector<1x1x1xf32>
    %34 = arith.addf %29, %33 : f32
    %c2_14 = arith.constant 2 : index
    %35 = memref.load %arg12[%c2_14] : memref<8xf32, #tpu.memory_space<smem>>
    memref.store %34, %arg12[%c2_14] : memref<8xf32, #tpu.memory_space<smem>>
    %c3 = arith.constant 3 : index
    %36 = memref.load %arg12[%c3] : memref<8xf32, #tpu.memory_space<smem>>
    %37 = vector.shape_cast %4 : vector<1x512xf32> to vector<1x1x512xf32>
    %cst_15 = arith.constant dense<0.000000e+00> : vector<1xf32>
    %38 = vector.multi_reduction <add>, %37, %cst_15 [1, 2] : vector<1x1x512xf32> to vector<1xf32>
    %39 = vector.shape_cast %38 : vector<1xf32> to vector<1x1x1xf32>
    %40 = vector.extract %39[0, 0, 0] : f32 from vector<1x1x1xf32>
    %41 = arith.addf %36, %40 : f32
    %c3_16 = arith.constant 3 : index
    %42 = memref.load %arg12[%c3_16] : memref<8xf32, #tpu.memory_space<smem>>
    memref.store %41, %arg12[%c3_16] : memref<8xf32, #tpu.memory_space<smem>>
    %c0_17 = arith.constant 0 : index
    %c0_18 = arith.constant 0 : index
    %43 = vector.load %arg6[%c0_17, %c0_18] : memref<12x512xbf16, #tpu.memory_space<vmem>>, vector<12x512xbf16>
    %44 = arith.extf %43 : vector<12x512xbf16> to vector<12x512xf32>
    %c1_i32 = arith.constant 1 : i32
    %45 = tpu.dynamic_rotate %44 by %c1_i32 dim 1 : vector<12x512xf32>, i32 -> vector<12x512xf32>
    %46 = arith.subf %44, %45 : vector<12x512xf32>
    %c4 = arith.constant 4 : index
    %47 = memref.load %arg12[%c4] : memref<8xf32, #tpu.memory_space<smem>>
    %48 = arith.mulf %46, %46 : vector<12x512xf32>
    %49 = vector.shape_cast %48 : vector<12x512xf32> to vector<1x12x512xf32>
    %cst_19 = arith.constant dense<0.000000e+00> : vector<1xf32>
    %50 = vector.multi_reduction <add>, %49, %cst_19 [1, 2] : vector<1x12x512xf32> to vector<1xf32>
    %51 = vector.shape_cast %50 : vector<1xf32> to vector<1x1x1xf32>
    %52 = vector.extract %51[0, 0, 0] : f32 from vector<1x1x1xf32>
    %53 = arith.addf %47, %52 : f32
    %c4_20 = arith.constant 4 : index
    %54 = memref.load %arg12[%c4_20] : memref<8xf32, #tpu.memory_space<smem>>
    memref.store %53, %arg12[%c4_20] : memref<8xf32, #tpu.memory_space<smem>>
    %c0_21 = arith.constant 0 : index
    %c0_22 = arith.constant 0 : index
    %55 = vector.load %arg7[%c0_21, %c0_22] : memref<3x512xbf16, #tpu.memory_space<vmem>>, vector<3x512xbf16>
    %56 = arith.extf %55 : vector<3x512xbf16> to vector<3x512xf32>
    %c0_23 = arith.constant 0 : index
    %c0_24 = arith.constant 0 : index
    %57 = vector.load %arg8[%c0_23, %c0_24] : memref<3x512xbf16, #tpu.memory_space<vmem>>, vector<3x512xbf16>
    %58 = arith.extf %57 : vector<3x512xbf16> to vector<3x512xf32>
    %59 = vector.extract_strided_slice %56 {offsets = [0, 0], sizes = [1, 512], strides = [1, 1]} : vector<3x512xf32> to vector<1x512xf32>
    %60 = vector.extract_strided_slice %58 {offsets = [0, 0], sizes = [1, 512], strides = [1, 1]} : vector<3x512xf32> to vector<1x512xf32>
    %61 = arith.mulf %59, %60 : vector<1x512xf32>
    %62 = vector.extract_strided_slice %56 {offsets = [1, 0], sizes = [1, 512], strides = [1, 1]} : vector<3x512xf32> to vector<1x512xf32>
    %63 = vector.extract_strided_slice %58 {offsets = [1, 0], sizes = [1, 512], strides = [1, 1]} : vector<3x512xf32> to vector<1x512xf32>
    %64 = arith.mulf %62, %63 : vector<1x512xf32>
    %65 = arith.addf %61, %64 : vector<1x512xf32>
    %66 = vector.extract_strided_slice %56 {offsets = [2, 0], sizes = [1, 512], strides = [1, 1]} : vector<3x512xf32> to vector<1x512xf32>
    %67 = vector.extract_strided_slice %58 {offsets = [2, 0], sizes = [1, 512], strides = [1, 1]} : vector<3x512xf32> to vector<1x512xf32>
    %68 = arith.mulf %66, %67 : vector<1x512xf32>
    %69 = arith.addf %65, %68 : vector<1x512xf32>
    %c5 = arith.constant 5 : index
    %70 = memref.load %arg12[%c5] : memref<8xf32, #tpu.memory_space<smem>>
    %cst_25 = arith.constant 1.000000e+00 : f32
    %71 = vector.broadcast %cst_25 : f32 to vector<1x512xf32>
    %72 = arith.subf %71, %69 : vector<1x512xf32>
    %73 = arith.mulf %72, %3 : vector<1x512xf32>
    %74 = vector.shape_cast %73 : vector<1x512xf32> to vector<1x1x512xf32>
    %cst_26 = arith.constant dense<0.000000e+00> : vector<1xf32>
    %75 = vector.multi_reduction <add>, %74, %cst_26 [1, 2] : vector<1x1x512xf32> to vector<1xf32>
    %76 = vector.shape_cast %75 : vector<1xf32> to vector<1x1x1xf32>
    %77 = vector.extract %76[0, 0, 0] : f32 from vector<1x1x1xf32>
    %78 = arith.addf %70, %77 : f32
    %c5_27 = arith.constant 5 : index
    %79 = memref.load %arg12[%c5_27] : memref<8xf32, #tpu.memory_space<smem>>
    memref.store %78, %arg12[%c5_27] : memref<8xf32, #tpu.memory_space<smem>>
    %c0_28 = arith.constant 0 : index
    %c0_29 = arith.constant 0 : index
    %80 = vector.load %arg5[%c0_28, %c0_29] : memref<3x512xbf16, #tpu.memory_space<vmem>>, vector<3x512xbf16>
    %81 = arith.extf %80 : vector<3x512xbf16> to vector<3x512xf32>
    %c1_i32_30 = arith.constant 1 : i32
    %82 = tpu.dynamic_rotate %81 by %c1_i32_30 dim 1 : vector<3x512xf32>, i32 -> vector<3x512xf32>
    %83 = arith.subf %81, %82 : vector<3x512xf32>
    %84 = vector.extract_strided_slice %83 {offsets = [0, 0], sizes = [1, 512], strides = [1, 1]} : vector<3x512xf32> to vector<1x512xf32>
    %85 = arith.mulf %84, %84 : vector<1x512xf32>
    %86 = vector.extract_strided_slice %83 {offsets = [1, 0], sizes = [1, 512], strides = [1, 1]} : vector<3x512xf32> to vector<1x512xf32>
    %87 = arith.mulf %86, %86 : vector<1x512xf32>
    %88 = arith.addf %85, %87 : vector<1x512xf32>
    %89 = vector.extract_strided_slice %83 {offsets = [2, 0], sizes = [1, 512], strides = [1, 1]} : vector<3x512xf32> to vector<1x512xf32>
    %90 = arith.mulf %89, %89 : vector<1x512xf32>
    %91 = arith.addf %88, %90 : vector<1x512xf32>
    %cst_31 = arith.constant 9.99999996E-13 : f32
    %92 = vector.broadcast %cst_31 : f32 to vector<1x512xf32>
    %93 = arith.addf %91, %92 : vector<1x512xf32>
    %94 = math.sqrt %93 : vector<1x512xf32>
    %c1_i32_32 = arith.constant 1 : i32
    %95 = tpu.dynamic_rotate %6 by %c1_i32_32 dim 1 : vector<6x512xf32>, i32 -> vector<6x512xf32>
    %96 = arith.subf %6, %95 : vector<6x512xf32>
    %97 = vector.extract_strided_slice %96 {offsets = [0, 0], sizes = [1, 512], strides = [1, 1]} : vector<6x512xf32> to vector<1x512xf32>
    %98 = vector.extract_strided_slice %96 {offsets = [1, 0], sizes = [1, 512], strides = [1, 1]} : vector<6x512xf32> to vector<1x512xf32>
    %99 = vector.extract_strided_slice %96 {offsets = [2, 0], sizes = [1, 512], strides = [1, 1]} : vector<6x512xf32> to vector<1x512xf32>
    %100 = arith.mulf %97, %97 : vector<1x512xf32>
    %101 = arith.mulf %98, %98 : vector<1x512xf32>
    %102 = arith.addf %100, %101 : vector<1x512xf32>
    %103 = arith.mulf %99, %99 : vector<1x512xf32>
    %104 = arith.addf %102, %103 : vector<1x512xf32>
    %cst_33 = arith.constant 9.99999996E-13 : f32
    %105 = vector.broadcast %cst_33 : f32 to vector<1x512xf32>
    %106 = arith.addf %104, %105 : vector<1x512xf32>
    %107 = math.sqrt %106 : vector<1x512xf32>
    %108 = arith.subf %107, %94 : vector<1x512xf32>
    %109 = arith.mulf %108, %108 : vector<1x512xf32>
    %110 = vector.shape_cast %109 : vector<1x512xf32> to vector<1x1x512xf32>
    %cst_34 = arith.constant dense<0.000000e+00> : vector<1xf32>
    %111 = vector.multi_reduction <add>, %110, %cst_34 [1, 2] : vector<1x1x512xf32> to vector<1xf32>
    %112 = vector.shape_cast %111 : vector<1xf32> to vector<1x1x1xf32>
    %113 = vector.extract %112[0, 0, 0] : f32 from vector<1x1x1xf32>
    %cst_35 = arith.constant 0.000000e+00 : f32
    %114 = arith.addf %cst_35, %113 : f32
    %115 = vector.extract_strided_slice %96 {offsets = [3, 0], sizes = [1, 512], strides = [1, 1]} : vector<6x512xf32> to vector<1x512xf32>
    %116 = vector.extract_strided_slice %96 {offsets = [4, 0], sizes = [1, 512], strides = [1, 1]} : vector<6x512xf32> to vector<1x512xf32>
    %117 = vector.extract_strided_slice %96 {offsets = [5, 0], sizes = [1, 512], strides = [1, 1]} : vector<6x512xf32> to vector<1x512xf32>
    %118 = arith.mulf %115, %115 : vector<1x512xf32>
    %119 = arith.mulf %116, %116 : vector<1x512xf32>
    %120 = arith.addf %118, %119 : vector<1x512xf32>
    %121 = arith.mulf %117, %117 : vector<1x512xf32>
    %122 = arith.addf %120, %121 : vector<1x512xf32>
    %cst_36 = arith.constant 9.99999996E-13 : f32
    %123 = vector.broadcast %cst_36 : f32 to vector<1x512xf32>
    %124 = arith.addf %122, %123 : vector<1x512xf32>
    %125 = math.sqrt %124 : vector<1x512xf32>
    %126 = arith.subf %125, %94 : vector<1x512xf32>
    %127 = arith.mulf %126, %126 : vector<1x512xf32>
    %128 = vector.shape_cast %127 : vector<1x512xf32> to vector<1x1x512xf32>
    %cst_37 = arith.constant dense<0.000000e+00> : vector<1xf32>
    %129 = vector.multi_reduction <add>, %128, %cst_37 [1, 2] : vector<1x1x512xf32> to vector<1xf32>
    %130 = vector.shape_cast %129 : vector<1xf32> to vector<1x1x1xf32>
    %131 = vector.extract %130[0, 0, 0] : f32 from vector<1x1x1xf32>
    %132 = arith.addf %114, %131 : f32
    %c6 = arith.constant 6 : index
    %133 = memref.load %arg12[%c6] : memref<8xf32, #tpu.memory_space<smem>>
    %134 = arith.addf %133, %132 : f32
    %c6_38 = arith.constant 6 : index
    %135 = memref.load %arg12[%c6_38] : memref<8xf32, #tpu.memory_space<smem>>
    memref.store %134, %arg12[%c6_38] : memref<8xf32, #tpu.memory_space<smem>>
    %c1_i32_39 = arith.constant 1 : i32
    %136 = arith.cmpi eq, %arg0, %c1_i32_39 : i32
    %137 = arith.extui %136 : i1 to i32
    %c0_i32_40 = arith.constant 0 : i32
    %138 = arith.cmpi ne, %137, %c0_i32_40 : i32
    scf.if %138 {
      %c2_41 = arith.constant 2 : index
      %139 = memref.load %arg12[%c2_41] : memref<8xf32, #tpu.memory_space<smem>>
      %cst_42 = arith.constant 1.000000e+00 : f32
      %140 = arith.maximumf %139, %cst_42 : f32
      %c3_43 = arith.constant 3 : index
      %141 = memref.load %arg12[%c3_43] : memref<8xf32, #tpu.memory_space<smem>>
      %cst_44 = arith.constant 1.000000e+00 : f32
      %142 = arith.maximumf %141, %cst_44 : f32
      %c0_45 = arith.constant 0 : index
      %c0_46 = arith.constant 0 : index
      %143 = vector.load %arg9[%c0_45, %c0_46] : memref<6x8xbf16, #tpu.memory_space<vmem>>, vector<6x8xbf16>
      %144 = arith.extf %143 : vector<6x8xbf16> to vector<6x8xf32>
      %c0_47 = arith.constant 0 : index
      %c0_48 = arith.constant 0 : index
      %145 = vector.load %arg10[%c0_47, %c0_48] : memref<6x8xbf16, #tpu.memory_space<vmem>>, vector<6x8xbf16>
      %146 = arith.extf %145 : vector<6x8xbf16> to vector<6x8xf32>
      %147 = arith.subf %144, %146 : vector<6x8xf32>
      %c0_49 = arith.constant 0 : index
      %148 = memref.load %arg12[%c0_49] : memref<8xf32, #tpu.memory_space<smem>>
      %cst_50 = arith.constant 2.000000e+00 : f32
      %cst_51 = arith.constant 3.000000e+00 : f32
      %149 = arith.mulf %cst_50, %cst_51 : f32
      %150 = arith.mulf %149, %140 : f32
      %151 = arith.divf %148, %150 : f32
      %c0_52 = arith.constant 0 : index
      %152 = memref.load %arg11[%c0_52] : memref<8xf32, #tpu.memory_space<smem>>
      memref.store %151, %arg11[%c0_52] : memref<8xf32, #tpu.memory_space<smem>>
      %c1_53 = arith.constant 1 : index
      %153 = memref.load %arg12[%c1_53] : memref<8xf32, #tpu.memory_space<smem>>
      %cst_54 = arith.constant 2.000000e+00 : f32
      %cst_55 = arith.constant 3.000000e+00 : f32
      %154 = arith.mulf %cst_54, %cst_55 : f32
      %155 = arith.mulf %154, %142 : f32
      %156 = arith.divf %153, %155 : f32
      %c1_56 = arith.constant 1 : index
      %157 = memref.load %arg11[%c1_56] : memref<8xf32, #tpu.memory_space<smem>>
      memref.store %156, %arg11[%c1_56] : memref<8xf32, #tpu.memory_space<smem>>
      %c4_57 = arith.constant 4 : index
      %158 = memref.load %arg12[%c4_57] : memref<8xf32, #tpu.memory_space<smem>>
      %cst_58 = arith.constant 1.200000e+01 : f32
      %cst_59 = arith.constant 1.024000e+03 : f32
      %159 = arith.mulf %cst_58, %cst_59 : f32
      %160 = arith.divf %158, %159 : f32
      %c2_60 = arith.constant 2 : index
      %161 = memref.load %arg11[%c2_60] : memref<8xf32, #tpu.memory_space<smem>>
      memref.store %160, %arg11[%c2_60] : memref<8xf32, #tpu.memory_space<smem>>
      %162 = arith.mulf %147, %147 : vector<6x8xf32>
      %163 = vector.shape_cast %162 : vector<6x8xf32> to vector<1x6x8xf32>
      %cst_61 = arith.constant dense<0.000000e+00> : vector<1xf32>
      %164 = vector.multi_reduction <add>, %163, %cst_61 [1, 2] : vector<1x6x8xf32> to vector<1xf32>
      %165 = vector.shape_cast %164 : vector<1xf32> to vector<1x1x1xf32>
      %166 = vector.extract %165[0, 0, 0] : f32 from vector<1x1x1xf32>
      %cst_62 = arith.constant 4.800000e+01 : f32
      %167 = arith.divf %166, %cst_62 : f32
      %c3_63 = arith.constant 3 : index
      %168 = memref.load %arg11[%c3_63] : memref<8xf32, #tpu.memory_space<smem>>
      memref.store %167, %arg11[%c3_63] : memref<8xf32, #tpu.memory_space<smem>>
      %c5_64 = arith.constant 5 : index
      %169 = memref.load %arg12[%c5_64] : memref<8xf32, #tpu.memory_space<smem>>
      %170 = arith.divf %169, %140 : f32
      %c4_65 = arith.constant 4 : index
      %171 = memref.load %arg11[%c4_65] : memref<8xf32, #tpu.memory_space<smem>>
      memref.store %170, %arg11[%c4_65] : memref<8xf32, #tpu.memory_space<smem>>
      %c6_66 = arith.constant 6 : index
      %172 = memref.load %arg12[%c6_66] : memref<8xf32, #tpu.memory_space<smem>>
      %cst_67 = arith.constant 2.000000e+00 : f32
      %cst_68 = arith.constant 1.024000e+03 : f32
      %173 = arith.mulf %cst_67, %cst_68 : f32
      %174 = arith.divf %172, %173 : f32
      %c5_69 = arith.constant 5 : index
      %175 = memref.load %arg11[%c5_69] : memref<8xf32, #tpu.memory_space<smem>>
      memref.store %174, %arg11[%c5_69] : memref<8xf32, #tpu.memory_space<smem>>
    } else {
    }
    return
  }
  func.func @transform_0(%arg0: i32) -> (i32, i32) {
    %c0_i32 = arith.constant 0 : i32
    %c0_i32_0 = arith.constant 0 : i32
    return %c0_i32, %arg0 : i32, i32
  }
  func.func @transform_1(%arg0: i32) -> (i32, i32) {
    %c0_i32 = arith.constant 0 : i32
    %c0_i32_0 = arith.constant 0 : i32
    return %c0_i32, %arg0 : i32, i32
  }
  func.func @transform_2(%arg0: i32) -> (i32, i32) {
    %c0_i32 = arith.constant 0 : i32
    %c0_i32_0 = arith.constant 0 : i32
    return %c0_i32, %arg0 : i32, i32
  }
  func.func @transform_3(%arg0: i32) -> (i32, i32) {
    %c0_i32 = arith.constant 0 : i32
    %c0_i32_0 = arith.constant 0 : i32
    return %c0_i32, %arg0 : i32, i32
  }
  func.func @transform_4(%arg0: i32) -> (i32, i32) {
    %c0_i32 = arith.constant 0 : i32
    %c0_i32_0 = arith.constant 0 : i32
    return %c0_i32, %arg0 : i32, i32
  }
  func.func @transform_5(%arg0: i32) -> (i32, i32) {
    %c0_i32 = arith.constant 0 : i32
    %c0_i32_0 = arith.constant 0 : i32
    return %c0_i32, %arg0 : i32, i32
  }
  func.func @transform_6(%arg0: i32) -> (i32, i32) {
    %c0_i32 = arith.constant 0 : i32
    %c0_i32_0 = arith.constant 0 : i32
    return %c0_i32, %arg0 : i32, i32
  }
  func.func @transform_7(%arg0: i32) -> (i32, i32) {
    %c0_i32 = arith.constant 0 : i32
    %c0_i32_0 = arith.constant 0 : i32
    return %c0_i32, %arg0 : i32, i32
  }
  func.func @transform_8(%arg0: i32) -> (i32, i32) {
    %c0_i32 = arith.constant 0 : i32
    %c0_i32_0 = arith.constant 0 : i32
    %c0_i32_1 = arith.constant 0 : i32
    return %c0_i32, %c0_i32_0 : i32, i32
  }
  func.func @transform_9(%arg0: i32) -> (i32, i32) {
    %c0_i32 = arith.constant 0 : i32
    %c0_i32_0 = arith.constant 0 : i32
    %c0_i32_1 = arith.constant 0 : i32
    return %c0_i32, %c0_i32_0 : i32, i32
  }
  func.func @transform_10(%arg0: i32) -> i32 {
    %c0_i32 = arith.constant 0 : i32
    %c0_i32_0 = arith.constant 0 : i32
    return %c0_i32 : i32
  }
}

</mosaic_0001>

<llo_original>
// kernel: combined_loss.1
$region0: #{combined_loss.1}
  #allocation0 [shape = 'u32[]', space=smem, size = 0x4, offset = 0x4, fixed_abs, tag = 'smem constant byte address 0x4 - core index']
  #allocation1 [shape = 'u32[72,128]{1,0:T(1,128)}', space=vmem, size = 0x9000, scoped, tag = 'internal scratch']
  #allocation2 [shape = 'f32[8]{0:T(128)}', space=smem, size = 0x200, scoped, tag = 'scratch operand']
  %s0 = inlined_call_operand.vmem [shape: f32[1,1024], index: 0, kind: input, shape index: {}]
  %s1 = inlined_call_operand.vmem [shape: f32[1,1024], index: 1, kind: input, shape index: {}]
  %s2 = inlined_call_operand.vmem [shape: bf16[6,1024], index: 2, kind: input, shape index: {}]
  %s3 = inlined_call_operand.vmem [shape: bf16[6,1024], index: 3, kind: input, shape index: {}]
  %s4 = inlined_call_operand.vmem [shape: bf16[3,1024], index: 4, kind: input, shape index: {}]
  %s5 = inlined_call_operand.vmem [shape: bf16[12,1024], index: 5, kind: input, shape index: {}]
  %s6 = inlined_call_operand.vmem [shape: bf16[3,1024], index: 6, kind: input, shape index: {}]
  %s7 = inlined_call_operand.vmem [shape: bf16[3,1024], index: 7, kind: input, shape index: {}]
  %s8 = inlined_call_operand.vmem [shape: bf16[6,8], index: 8, kind: input, shape index: {}]
  %s9 = inlined_call_operand.vmem [shape: bf16[6,8], index: 9, kind: input, shape index: {}]
  %s10 = inlined_call_operand.vmem [shape: f32[8], index: 10, kind: output, shape index: {}]
  %s11 = sld [smem:[#allocation0]]
  $region104: #{combined_loss.1} parent=0
    _
  %s13 = ssub.s32 1, %s11
  %s14 = scalar_select 0, %s13, %s11
  $region1: #{combined_loss.1} parent=0
    #allocation3 [shape = 'u8[32768]{0}', space=vmem, size = 0x8000, scoped, tag = 'input window, operand 5']
    #allocation4 [shape = 'u8[512]{0}', space=smem, size = 0x200, scoped, tag = 'output window, operand 0, single buffered']
    #allocation5 [shape = 's32[2]{0}', space=sflag, size = 0x8, scoped, tag = 'scoped memory for combined_loss.1']
    %15 = vsyncpa [#allocation5], 0
    loop: start=0, step=1, limit=4
    $region2: #{combined_loss.1} parent=1 // loop_pre_header
      _
    $region3: #{combined_loss.1} parent=1 // loop_header
      %s17 = sphi 0, %s21
      %p18 = scmp.ge.s32.totalorder %s17, 4
      %s27 = sphi 0, %s29
      %s30 = sphi 0, %s27
      %s31 = sphi 0, %s30
      %s47 = sphi 0, %s31
      %s53 = sphi 0, %s55
      %s56 = sphi 0, %s53
      %s57 = sphi 0, %s56
      %s73 = sphi 0, %s57
      %s79 = sphi 0, %s81
      %s82 = sphi 0, %s79
      %s83 = sphi 0, %s82
      %s99 = sphi 0, %s83
      %s105 = sphi 0, %s107
      %s108 = sphi 0, %s105
      %s109 = sphi 0, %s108
      %s125 = sphi 0, %s109
      %s131 = sphi 0, %s133
      %s134 = sphi 0, %s131
      %s135 = sphi 0, %s134
      %s151 = sphi 0, %s135
      %s157 = sphi 0, %s159
      %s160 = sphi 0, %s157
      %s161 = sphi 0, %s160
      %s177 = sphi 0, %s161
      %s183 = sphi 0, %s185
      %s186 = sphi 0, %s183
      %s187 = sphi 0, %s186
      %s203 = sphi 0, %s187
      %s209 = sphi 0, %s211
      %s212 = sphi 0, %s209
      %s213 = sphi 0, %s212
      %s229 = sphi 0, %s213
      %s233 = sphi 0, %s233
      %s235 = sphi 0, %s233
      %s236 = sphi 0, %s235
      %s250 = sphi 0, %s236
      %s254 = sphi 0, %s254
      %s256 = sphi 0, %s254
      %s257 = sphi 0, %s256
      %s271 = sphi 0, %s257
      %s275 = sphi 0, %s275
      %s277 = sphi 0, %s275
      %s278 = sphi 0, %s277
      %s292 = sphi 0, %s278
    $region4: #{combined_loss.1} parent=1 // loop_header_branch
      %20 = sbr.rel (%p18) target = $region8
    $region5: #{combined_loss.1} parent=1 // loop_body
      %s22 = ssub.s32 %s17, 1
      %s23 = ssub.s32 %s17, 2
      %s24 = sadd.s32 %s17, 1
      %s25 = ssub.s32 %s17, %s24
      %p26 = scmp.eq.s32.totalorder %s25, 0
      %s28 = sadd.s32 %s27, 1
      %s29 = scalar_select %p26, %s27, %s28
      %p32 = pneg %p26
      %p33 = scmp.eq.s32.totalorder %s17, 1
      %p34 = por %p32, %p33
      %p35 = scmp.ne.s32.totalorder %s27, %s30
      %p36 = scmp.eq.s32.totalorder %s17, 0
      %p37 = por %p35, %p36
      %p38 = scmp.ne.s32.totalorder %s27, %s30
      %p39 = scmp.eq.s32.totalorder %s22, 1
      %p40 = por %p38, %p39
      %p41 = scmp.ne.s32.totalorder %s30, %s31
      %p42 = scmp.eq.s32.totalorder %s22, 0
      %p43 = por %p41, %p42
      %p44 = scmp.ne.s32.totalorder %s30, %s31
      %p45 = scmp.eq.s32.totalorder %s23, 1
      %p46 = por %p44, %p45
      %p48 = scmp.ne.s32.totalorder %s31, %s47
      %p49 = scmp.eq.s32.totalorder %s23, 0
      %p50 = por %p48, %p49
      %s51 = ssub.s32 %s17, %s24
      %p52 = scmp.eq.s32.totalorder %s51, 0
      %s54 = sadd.s32 %s53, 1
      %s55 = scalar_select %p52, %s53, %s54
      %p58 = pneg %p52
      %p59 = scmp.eq.s32.totalorder %s17, 1
      %p60 = por %p58, %p59
      %p61 = scmp.ne.s32.totalorder %s53, %s56
      %p62 = scmp.eq.s32.totalorder %s17, 0
      %p63 = por %p61, %p62
      %p64 = scmp.ne.s32.totalorder %s53, %s56
      %p65 = scmp.eq.s32.totalorder %s22, 1
      %p66 = por %p64, %p65
      %p67 = scmp.ne.s32.totalorder %s56, %s57
      %p68 = scmp.eq.s32.totalorder %s22, 0
      %p69 = por %p67, %p68
      %p70 = scmp.ne.s32.totalorder %s56, %s57
      %p71 = scmp.eq.s32.totalorder %s23, 1
      %p72 = por %p70, %p71
      %p74 = scmp.ne.s32.totalorder %s57, %s73
      %p75 = scmp.eq.s32.totalorder %s23, 0
      %p76 = por %p74, %p75
      %s77 = ssub.s32 %s17, %s24
      %p78 = scmp.eq.s32.totalorder %s77, 0
      %s80 = sadd.s32 %s79, 1
      %s81 = scalar_select %p78, %s79, %s80
      %p84 = pneg %p78
      %p85 = scmp.eq.s32.totalorder %s17, 1
      %p86 = por %p84, %p85
      %p87 = scmp.ne.s32.totalorder %s79, %s82
      %p88 = scmp.eq.s32.totalorder %s17, 0
      %p89 = por %p87, %p88
      %p90 = scmp.ne.s32.totalorder %s79, %s82
      %p91 = scmp.eq.s32.totalorder %s22, 1
      %p92 = por %p90, %p91
      %p93 = scmp.ne.s32.totalorder %s82, %s83
      %p94 = scmp.eq.s32.totalorder %s22, 0
      %p95 = por %p93, %p94
      %p96 = scmp.ne.s32.totalorder %s82, %s83
      %p97 = scmp.eq.s32.totalorder %s23, 1
      %p98 = por %p96, %p97
      %p100 = scmp.ne.s32.totalorder %s83, %s99
      %p101 = scmp.eq.s32.totalorder %s23, 0
      %p102 = por %p100, %p101
      %s103 = ssub.s32 %s17, %s24
      %p104 = scmp.eq.s32.totalorder %s103, 0
      %s106 = sadd.s32 %s105, 1
      %s107 = scalar_select %p104, %s105, %s106
      %p110 = pneg %p104
      %p111 = scmp.eq.s32.totalorder %s17, 1
      %p112 = por %p110, %p111
      %p113 = scmp.ne.s32.totalorder %s105, %s108
      %p114 = scmp.eq.s32.totalorder %s17, 0
      %p115 = por %p113, %p114
      %p116 = scmp.ne.s32.totalorder %s105, %s108
      %p117 = scmp.eq.s32.totalorder %s22, 1
      %p118 = por %p116, %p117
      %p119 = scmp.ne.s32.totalorder %s108, %s109
      %p120 = scmp.eq.s32.totalorder %s22, 0
      %p121 = por %p119, %p120
      %p122 = scmp.ne.s32.totalorder %s108, %s109
      %p123 = scmp.eq.s32.totalorder %s23, 1
      %p124 = por %p122, %p123
      %p126 = scmp.ne.s32.totalorder %s109, %s125
      %p127 = scmp.eq.s32.totalorder %s23, 0
      %p128 = por %p126, %p127
      %s129 = ssub.s32 %s17, %s24
      %p130 = scmp.eq.s32.totalorder %s129, 0
      %s132 = sadd.s32 %s131, 1
      %s133 = scalar_select %p130, %s131, %s132
      %p136 = pneg %p130
      %p137 = scmp.eq.s32.totalorder %s17, 1
      %p138 = por %p136, %p137
      %p139 = scmp.ne.s32.totalorder %s131, %s134
      %p140 = scmp.eq.s32.totalorder %s17, 0
      %p141 = por %p139, %p140
      %p142 = scmp.ne.s32.totalorder %s131, %s134
      %p143 = scmp.eq.s32.totalorder %s22, 1
      %p144 = por %p142, %p143
      %p145 = scmp.ne.s32.totalorder %s134, %s135
      %p146 = scmp.eq.s32.totalorder %s22, 0
      %p147 = por %p145, %p146
      %p148 = scmp.ne.s32.totalorder %s134, %s135
      %p149 = scmp.eq.s32.totalorder %s23, 1
      %p150 = por %p148, %p149
      %p152 = scmp.ne.s32.totalorder %s135, %s151
      %p153 = scmp.eq.s32.totalorder %s23, 0
      %p154 = por %p152, %p153
      %s155 = ssub.s32 %s17, %s24
      %p156 = scmp.eq.s32.totalorder %s155, 0
      %s158 = sadd.s32 %s157, 1
      %s159 = scalar_select %p156, %s157, %s158
      %p162 = pneg %p156
      %p163 = scmp.eq.s32.totalorder %s17, 1
      %p164 = por %p162, %p163
      %p165 = scmp.ne.s32.totalorder %s157, %s160
      %p166 = scmp.eq.s32.totalorder %s17, 0
      %p167 = por %p165, %p166
      %p168 = scmp.ne.s32.totalorder %s157, %s160
      %p169 = scmp.eq.s32.totalorder %s22, 1
      %p170 = por %p168, %p169
      %p171 = scmp.ne.s32.totalorder %s160, %s161
      %p172 = scmp.eq.s32.totalorder %s22, 0
      %p173 = por %p171, %p172
      %p174 = scmp.ne.s32.totalorder %s160, %s161
      %p175 = scmp.eq.s32.totalorder %s23, 1
      %p176 = por %p174, %p175
      %p178 = scmp.ne.s32.totalorder %s161, %s177
      %p179 = scmp.eq.s32.totalorder %s23, 0
      %p180 = por %p178, %p179
      %s181 = ssub.s32 %s17, %s24
      %p182 = scmp.eq.s32.totalorder %s181, 0
      %s184 = sadd.s32 %s183, 1
      %s185 = scalar_select %p182, %s183, %s184
      %p188 = pneg %p182
      %p189 = scmp.eq.s32.totalorder %s17, 1
      %p190 = por %p188, %p189
      %p191 = scmp.ne.s32.totalorder %s183, %s186
      %p192 = scmp.eq.s32.totalorder %s17, 0
      %p193 = por %p191, %p192
      %p194 = scmp.ne.s32.totalorder %s183, %s186
      %p195 = scmp.eq.s32.totalorder %s22, 1
      %p196 = por %p194, %p195
      %p197 = scmp.ne.s32.totalorder %s186, %s187
      %p198 = scmp.eq.s32.totalorder %s22, 0
      %p199 = por %p197, %p198
      %p200 = scmp.ne.s32.totalorder %s186, %s187
      %p201 = scmp.eq.s32.totalorder %s23, 1
      %p202 = por %p200, %p201
      %p204 = scmp.ne.s32.totalorder %s187, %s203
      %p205 = scmp.eq.s32.totalorder %s23, 0
      %p206 = por %p204, %p205
      %s207 = ssub.s32 %s17, %s24
      %p208 = scmp.eq.s32.totalorder %s207, 0
      %s210 = sadd.s32 %s209, 1
      %s211 = scalar_select %p208, %s209, %s210
      %p214 = pneg %p208
      %p215 = scmp.eq.s32.totalorder %s17, 1
      %p216 = por %p214, %p215
      %p217 = scmp.ne.s32.totalorder %s209, %s212
      %p218 = scmp.eq.s32.totalorder %s17, 0
      %p219 = por %p217, %p218
      %p220 = scmp.ne.s32.totalorder %s209, %s212
      %p221 = scmp.eq.s32.totalorder %s22, 1
      %p222 = por %p220, %p221
      %p223 = scmp.ne.s32.totalorder %s212, %s213
      %p224 = scmp.eq.s32.totalorder %s22, 0
      %p225 = por %p223, %p224
      %p226 = scmp.ne.s32.totalorder %s212, %s213
      %p227 = scmp.eq.s32.totalorder %s23, 1
      %p228 = por %p226, %p227
      %p230 = scmp.ne.s32.totalorder %s213, %s229
      %p231 = scmp.eq.s32.totalorder %s23, 0
      %p232 = por %p230, %p231
      %s234 = sadd.s32 %s233, 1
      %p237 = scmp.eq.s32.totalorder %s17, 1
      %p238 = scmp.ne.s32.totalorder %s233, %s235
      %p239 = scmp.eq.s32.totalorder %s17, 0
      %p240 = por %p238, %p239
      %p241 = scmp.ne.s32.totalorder %s233, %s235
      %p242 = scmp.eq.s32.totalorder %s22, 1
      %p243 = por %p241, %p242
      %p244 = scmp.ne.s32.totalorder %s235, %s236
      %p245 = scmp.eq.s32.totalorder %s22, 0
      %p246 = por %p244, %p245
      %p247 = scmp.ne.s32.totalorder %s235, %s236
      %p248 = scmp.eq.s32.totalorder %s23, 1
      %p249 = por %p247, %p248
      %p251 = scmp.ne.s32.totalorder %s236, %s250
      %p252 = scmp.eq.s32.totalorder %s23, 0
      %p253 = por %p251, %p252
      %s255 = sadd.s32 %s254, 1
      %p258 = scmp.eq.s32.totalorder %s17, 1
      %p259 = scmp.ne.s32.totalorder %s254, %s256
      %p260 = scmp.eq.s32.totalorder %s17, 0
      %p261 = por %p259, %p260
      %p262 = scmp.ne.s32.totalorder %s254, %s256
      %p263 = scmp.eq.s32.totalorder %s22, 1
      %p264 = por %p262, %p263
      %p265 = scmp.ne.s32.totalorder %s256, %s257
      %p266 = scmp.eq.s32.totalorder %s22, 0
      %p267 = por %p265, %p266
      %p268 = scmp.ne.s32.totalorder %s256, %s257
      %p269 = scmp.eq.s32.totalorder %s23, 1
      %p270 = por %p268, %p269
      %p272 = scmp.ne.s32.totalorder %s257, %s271
      %p273 = scmp.eq.s32.totalorder %s23, 0
      %p274 = por %p272, %p273
      %s276 = sadd.s32 %s275, 1
      %p279 = scmp.eq.s32.totalorder %s17, 1
      %p280 = scmp.ne.s32.totalorder %s275, %s277
      %p281 = scmp.eq.s32.totalorder %s17, 0
      %p282 = por %p280, %p281
      %p283 = scmp.ne.s32.totalorder %s275, %s277
      %p284 = scmp.eq.s32.totalorder %s22, 1
      %p285 = por %p283, %p284
      %p286 = scmp.ne.s32.totalorder %s277, %s278
      %p287 = scmp.eq.s32.totalorder %s22, 0
      %p288 = por %p286, %p287
      %p289 = scmp.ne.s32.totalorder %s277, %s278
      %p290 = scmp.eq.s32.totalorder %s23, 1
      %p291 = por %p289, %p290
      %p293 = scmp.ne.s32.totalorder %s278, %s292
      %p294 = scmp.eq.s32.totalorder %s23, 0
      %p295 = por %p293, %p294
      %p296 = scmp.le.s32.totalorder 1, %s17
      %p297 = scmp.lt.s32.totalorder %s17, 3
      %p298 = pnand %p296, %p297
      %p299 = pneg %p298
      // Predicated region
      $region9: #{combined_loss.1} parent=5 // pred_check
        _
      $region10: #{combined_loss.1} parent=5 // pred_check_branch
        %301 = sbr.rel (%p298) target = $region12
      $region11: #{combined_loss.1} parent=5 // pred_region
        %s302 = ssub.s32 %s17, 1
        // Predicated region
        $region13: #{combined_loss.1} parent=11 // pred_check
          %p303 = pneg %p246
        $region14: #{combined_loss.1} parent=11 // pred_check_branch
          %305 = sbr.rel (%p303) target = $region16
        $region15: #{combined_loss.1} parent=11 // pred_region
          _
        $region16: #{combined_loss.1} parent=11 // pred_fallthru
          _
        // Predicated region
        $region17: #{combined_loss.1} parent=11 // pred_check
          %p306 = pneg %p267
        $region18: #{combined_loss.1} parent=11 // pred_check_branch
          %308 = sbr.rel (%p306) target = $region20
        $region19: #{combined_loss.1} parent=11 // pred_region
          _
        $region20: #{combined_loss.1} parent=11 // pred_fallthru
          _
      $region12: #{combined_loss.1} parent=5 // pred_fallthru
        _
      %p309 = scmp.lt.s32.totalorder %s17, 2
      // Predicated region
      $region21: #{combined_loss.1} parent=5 // pred_check
        %p310 = pneg %p309
      $region22: #{combined_loss.1} parent=5 // pred_check_branch
        %312 = sbr.rel (%p310) target = $region24
      $region23: #{combined_loss.1} parent=5 // pred_region
        // Predicated region
        $region25: #{combined_loss.1} parent=23 // pred_check
          %p313 = pneg %p37
        $region26: #{combined_loss.1} parent=23 // pred_check_branch
          %315 = sbr.rel (%p313) target = $region28
        $region27: #{combined_loss.1} parent=23 // pred_region
          %s316 = smul.u32 4, %s17
          %p317 = scmp.lt.s32.totalorder %s316, 7
          %s318 = scalar_select %p317, %s316, 7
          %s319 = scalar_lea.vmem %s0, %s318
          %s320 = smul.u32 4, %s17
        $region28: #{combined_loss.1} parent=23 // pred_fallthru
          _
        // Predicated region
        $region29: #{combined_loss.1} parent=23 // pred_check
          %p321 = pneg %p63
        $region30: #{combined_loss.1} parent=23 // pred_check_branch
          %323 = sbr.rel (%p321) target = $region32
        $region31: #{combined_loss.1} parent=23 // pred_region
          %s324 = smul.u32 4, %s17
          %p325 = scmp.lt.s32.totalorder %s324, 7
          %s326 = scalar_select %p325, %s324, 7
          %s327 = scalar_lea.vmem %s1, %s326
          %s328 = smul.u32 4, %s17
        $region32: #{combined_loss.1} parent=23 // pred_fallthru
          _
        // Predicated region
        $region33: #{combined_loss.1} parent=23 // pred_check
          %p329 = pneg %p89
        $region34: #{combined_loss.1} parent=23 // pred_check_branch
          %331 = sbr.rel (%p329) target = $region36
        $region35: #{combined_loss.1} parent=23 // pred_region
          %s332 = smul.u32 4, %s17
          %p333 = scmp.lt.s32.totalorder %s332, 7
          %s334 = scalar_select %p333, %s332, 7
          %s335 = smul.addr %s334, 4
          %s336 = scalar_lea.vmem %s2, %s335
          %s337 = smul.u32 4, %s17
        $region36: #{combined_loss.1} parent=23 // pred_fallthru
          _
        // Predicated region
        $region37: #{combined_loss.1} parent=23 // pred_check
          %p338 = pneg %p115
        $region38: #{combined_loss.1} parent=23 // pred_check_branch
          %340 = sbr.rel (%p338) target = $region40
        $region39: #{combined_loss.1} parent=23 // pred_region
          %s341 = smul.u32 4, %s17
          %p342 = scmp.lt.s32.totalorder %s341, 7
          %s343 = scalar_select %p342, %s341, 7
          %s344 = smul.addr %s343, 4
          %s345 = scalar_lea.vmem %s3, %s344
          %s346 = smul.u32 4, %s17
        $region40: #{combined_loss.1} parent=23 // pred_fallthru
          _
        // Predicated region
        $region41: #{combined_loss.1} parent=23 // pred_check
          %p347 = pneg %p141
        $region42: #{combined_loss.1} parent=23 // pred_check_branch
          %349 = sbr.rel (%p347) target = $region44
        $region43: #{combined_loss.1} parent=23 // pred_region
          %s350 = smul.u32 4, %s17
          %p351 = scmp.lt.s32.totalorder %s350, 7
          %s352 = scalar_select %p351, %s350, 7
          %s353 = smul.addr %s352, 2
          %s354 = scalar_lea.vmem %s4, %s353
          %s355 = smul.u32 4, %s17
        $region44: #{combined_loss.1} parent=23 // pred_fallthru
          _
        // Predicated region
        $region45: #{combined_loss.1} parent=23 // pred_check
          %p356 = pneg %p167
        $region46: #{combined_loss.1} parent=23 // pred_check_branch
          %358 = sbr.rel (%p356) target = $region48
        $region47: #{combined_loss.1} parent=23 // pred_region
          %s359 = sand.u32 %s157, 1
          %s360 = sand.u32 %s157, 1
          %s361 = smul.addr %s360, 32
          %s362 = scalar_lea.vmem [#allocation3], %s361
          %s363 = smul.u32 4, %s17
          %s364 = smul.addr %s363, 4
          %s365 = scalar_lea.vmem %s5, %s364
          // Predicated region
          $region49: #{combined_loss.1} parent=47 // pred_check
            _
          $region50: #{combined_loss.1} parent=47 // pred_check_branch
            %367 = sbr.rel (0) target = $region52
          $region51: #{combined_loss.1} parent=47 // pred_region
            // Predicated region
            $region53: #{combined_loss.1} parent=51 // pred_check
              _
            $region54: #{combined_loss.1} parent=51 // pred_check_branch
              %369 = sbr.rel (0) target = $region56
            $region55: #{combined_loss.1} parent=51 // pred_region
              loop: start=0, step=1, limit=1
              $region57: #{combined_loss.1} parent=55 // loop_pre_header
                _
              $region58: #{combined_loss.1} parent=55 // loop_header
                %s371 = sphi 0, %s375
                %p372 = scmp.ge.s32.totalorder %s371, 1
                %s376 = sphi %s365, %s365
                %s377 = sphi %s362, %s362
              $region59: #{combined_loss.1} parent=55 // loop_header_branch
                %374 = sbr.rel (%p372) target = $region63
              $region60: #{combined_loss.1} parent=55 // loop_body
                %v378 = vld [vmem:[%s376] sm:$0xff]
                %379 = vst [vmem:[%s377] sm:$0xff] %v378
                %v380 = vld [vmem:[%s376 + $0x8] sm:$0xff]
                %381 = vst [vmem:[%s377 + $0x8] sm:$0xff] %v380
                %v382 = vld [vmem:[%s376 + $0x20] sm:$0xff]
                %383 = vst [vmem:[%s377 + $0x10] sm:$0xff] %v382
                %v384 = vld [vmem:[%s376 + $0x28] sm:$0xff]
                %385 = vst [vmem:[%s377 + $0x18] sm:$0xff] %v384
              $region61: #{combined_loss.1} parent=55 // loop_footer
                %s375 = sadd.s32 1, %s371
              $region62: #{combined_loss.1} parent=55 // loop_footer_branch
                %370 = sbr.rel target = $region58
              $region63: #{combined_loss.1} parent=55 // loop_exit
                _
            $region56: #{combined_loss.1} parent=51 // pred_fallthru
              _
            // Predicated region
            $region64: #{combined_loss.1} parent=51 // pred_check
              _
            $region65: #{combined_loss.1} parent=51 // pred_check_branch
              %387 = sbr.rel target = $region67
            $region66: #{combined_loss.1} parent=51 // pred_region
              _
            $region67: #{combined_loss.1} parent=51 // pred_fallthru
              _
          $region52: #{combined_loss.1} parent=47 // pred_fallthru
            _
          %388 = vnop
        $region48: #{combined_loss.1} parent=23 // pred_fallthru
          _
        // Predicated region
        $region68: #{combined_loss.1} parent=23 // pred_check
          %p389 = pneg %p193
        $region69: #{combined_loss.1} parent=23 // pred_check_branch
          %391 = sbr.rel (%p389) target = $region71
        $region70: #{combined_loss.1} parent=23 // pred_region
          %s392 = smul.u32 4, %s17
          %p393 = scmp.lt.s32.totalorder %s392, 7
          %s394 = scalar_select %p393, %s392, 7
          %s395 = smul.addr %s394, 2
          %s396 = scalar_lea.vmem %s6, %s395
          %s397 = smul.u32 4, %s17
        $region71: #{combined_loss.1} parent=23 // pred_fallthru
          _
        // Predicated region
        $region72: #{combined_loss.1} parent=23 // pred_check
          %p398 = pneg %p219
        $region73: #{combined_loss.1} parent=23 // pred_check_branch
          %400 = sbr.rel (%p398) target = $region75
        $region74: #{combined_loss.1} parent=23 // pred_region
          %s401 = smul.u32 4, %s17
          %p402 = scmp.lt.s32.totalorder %s401, 7
          %s403 = scalar_select %p402, %s401, 7
          %s404 = smul.addr %s403, 2
          %s405 = scalar_lea.vmem %s7, %s404
          %s406 = smul.u32 4, %s17
        $region75: #{combined_loss.1} parent=23 // pred_fallthru
          _
      $region24: #{combined_loss.1} parent=5 // pred_fallthru
        _
      %p407 = scmp.le.s32.totalorder 1, %s17
      %p408 = scmp.lt.s32.totalorder %s17, 3
      %p409 = pnand %p407, %p408
      %p410 = pneg %p409
      // Predicated region
      $region76: #{combined_loss.1} parent=5 // pred_check
        _
      $region77: #{combined_loss.1} parent=5 // pred_check_branch
        %412 = sbr.rel (%p409) target = $region79
      $region78: #{combined_loss.1} parent=5 // pred_region
        %s413 = ssub.s32 %s17, 1
        %s414 = sand.u32 %s160, 1
        %s415 = sand.u32 %s160, 1
        %s416 = smul.addr %s415, 32
        %s417 = scalar_lea.vmem [#allocation3], %s416
        // Predicated region
        $region80: #{combined_loss.1} parent=78 // pred_check
          %p418 = pneg %p173
        $region81: #{combined_loss.1} parent=78 // pred_check_branch
          %420 = sbr.rel (%p418) target = $region83
        $region82: #{combined_loss.1} parent=78 // pred_region
          _
        $region83: #{combined_loss.1} parent=78 // pred_fallthru
          _
        %s421 = smul.u32 4, %s22
        %p422 = scmp.lt.s32.totalorder %s421, 7
        %s423 = scalar_select %p422, %s421, 7
        %s424 = scalar_lea.vmem %s0, %s423
        %p425 = pneg %p43
        %p426 = pneg %p40
        %s427 = smul.u32 4, %s22
        %p428 = scmp.lt.s32.totalorder %s427, 7
        %s429 = scalar_select %p428, %s427, 7
        %s430 = scalar_lea.vmem %s1, %s429
        %p431 = pneg %p69
        %p432 = pneg %p66
        %s433 = smul.u32 4, %s22
        %p434 = scmp.lt.s32.totalorder %s433, 7
        %s435 = scalar_select %p434, %s433, 7
        %s436 = smul.addr %s435, 4
        %s437 = scalar_lea.vmem %s2, %s436
        %p438 = pneg %p95
        %p439 = pneg %p92
        %s440 = smul.u32 4, %s22
        %p441 = scmp.lt.s32.totalorder %s440, 7
        %s442 = scalar_select %p441, %s440, 7
        %s443 = smul.addr %s442, 4
        %s444 = scalar_lea.vmem %s3, %s443
        %p445 = pneg %p121
        %p446 = pneg %p118
        %s447 = smul.u32 4, %s22
        %p448 = scmp.lt.s32.totalorder %s447, 7
        %s449 = scalar_select %p448, %s447, 7
        %s450 = smul.addr %s449, 2
        %s451 = scalar_lea.vmem %s4, %s450
        %p452 = pneg %p147
        %p453 = pneg %p144
        %s454 = sand.u32 %s160, 1
        %s455 = sand.u32 %s160, 1
        %s456 = smul.addr %s455, 32
        %s457 = scalar_lea.vmem [#allocation3], %s456
        %p458 = pneg %p173
        %p459 = pneg %p170
        %s460 = smul.u32 4, %s22
        %p461 = scmp.lt.s32.totalorder %s460, 7
        %s462 = scalar_select %p461, %s460, 7
        %s463 = smul.addr %s462, 2
        %s464 = scalar_lea.vmem %s6, %s463
        %p465 = pneg %p199
        %p466 = pneg %p196
        %s467 = smul.u32 4, %s22
        %p468 = scmp.lt.s32.totalorder %s467, 7
        %s469 = scalar_select %p468, %s467, 7
        %s470 = smul.addr %s469, 2
        %s471 = scalar_lea.vmem %s7, %s470
        %p472 = pneg %p225
        %p473 = pneg %p222
        %p474 = pneg %p246
        %p475 = pneg %p243
        %p476 = pneg %p267
        %p477 = pneg %p264
        %p478 = pneg %p288
        %p479 = pneg %p285
        %s480 = smul.u32 4, %s22
        %p481 = scmp.lt.s32.totalorder %s480, 7
        %s482 = scalar_select %p481, %s480, 7
        %s483 = scalar_lea.vmem %s0, %s482
        %s484 = smul.u32 4, %s22
        %s485 = smul.u32 4, %s22
        %p486 = scmp.lt.s32.totalorder %s485, 7
        %s487 = scalar_select %p486, %s485, 7
        %s488 = scalar_lea.vmem %s1, %s487
        %s489 = smul.u32 4, %s22
        %s490 = smul.u32 4, %s22
        %p491 = scmp.lt.s32.totalorder %s490, 7
        %s492 = scalar_select %p491, %s490, 7
        %s493 = smul.addr %s492, 4
        %s494 = scalar_lea.vmem %s2, %s493
        %s495 = smul.u32 4, %s22
        %s496 = smul.u32 4, %s22
        %p497 = scmp.lt.s32.totalorder %s496, 7
        %s498 = scalar_select %p497, %s496, 7
        %s499 = smul.addr %s498, 4
        %s500 = scalar_lea.vmem %s3, %s499
        %s501 = smul.u32 4, %s22
        %s502 = smul.u32 4, %s22
        %p503 = scmp.lt.s32.totalorder %s502, 7
        %s504 = scalar_select %p503, %s502, 7
        %s505 = smul.addr %s504, 2
        %s506 = scalar_lea.vmem %s4, %s505
        %s507 = smul.u32 4, %s22
        %s508 = smul.u32 4, %s22
        %s509 = smul.u32 4, %s22
        %p510 = scmp.lt.s32.totalorder %s509, 7
        %s511 = scalar_select %p510, %s509, 7
        %s512 = smul.addr %s511, 2
        %s513 = scalar_lea.vmem %s6, %s512
        %s514 = smul.u32 4, %s22
        %s515 = smul.u32 4, %s22
        %p516 = scmp.lt.s32.totalorder %s515, 7
        %s517 = scalar_select %p516, %s515, 7
        %s518 = smul.addr %s517, 2
        %s519 = scalar_lea.vmem %s7, %s518
        %s520 = smul.u32 4, %s22
        %p521 = scmp.eq.s32.totalorder %s22, 0
        // Predicated region
        $region84: #{combined_loss.1} parent=78 // pred_check
          %p522 = pneg %p521
        $region85: #{combined_loss.1} parent=78 // pred_check_branch
          %524 = sbr.rel (%p522) target = $region87
        $region86: #{combined_loss.1} parent=78 // pred_region
          %s525 = scalar_lea.smem [#allocation2], 0
          %526 = sst [smem:[%s525]] 0.0
          %s527 = scalar_lea.smem [#allocation4], 0
          %528 = sst [smem:[%s527]] 0.0
          %s529 = scalar_lea.smem [#allocation2], 1
          %530 = sst [smem:[%s529]] 0.0
          %s531 = scalar_lea.smem [#allocation4], 1
          %532 = sst [smem:[%s531]] 0.0
          %s533 = scalar_lea.smem [#allocation2], 2
          %534 = sst [smem:[%s533]] 0.0
          %s535 = scalar_lea.smem [#allocation4], 2
          %536 = sst [smem:[%s535]] 0.0
          %s537 = scalar_lea.smem [#allocation2], 3
          %538 = sst [smem:[%s537]] 0.0
          %s539 = scalar_lea.smem [#allocation4], 3
          %540 = sst [smem:[%s539]] 0.0
          %s541 = scalar_lea.smem [#allocation2], 4
          %542 = sst [smem:[%s541]] 0.0
          %s543 = scalar_lea.smem [#allocation4], 4
          %544 = sst [smem:[%s543]] 0.0
          %s545 = scalar_lea.smem [#allocation2], 5
          %546 = sst [smem:[%s545]] 0.0
          %s547 = scalar_lea.smem [#allocation4], 5
          %548 = sst [smem:[%s547]] 0.0
          %s549 = scalar_lea.smem [#allocation2], 6
          %550 = sst [smem:[%s549]] 0.0
          %s551 = scalar_lea.smem [#allocation4], 6
          %552 = sst [smem:[%s551]] 0.0
          %s553 = scalar_lea.smem [#allocation2], 7
          %554 = sst [smem:[%s553]] 0.0
          %s555 = scalar_lea.smem [#allocation4], 7
          %556 = sst [smem:[%s555]] 0.0
        $region87: #{combined_loss.1} parent=78 // pred_fallthru
          _
        %v557 = vld [vmem:[%s483] sm:$0xf]
        %v558 = vld [vmem:[%s488] sm:$0xf]
        %v559 = vld [vmem:[%s494] sm:$0x77]
        %v560 = vld [vmem:[%s494 + $0x8] sm:$0x77]
        %v561 = vunpack.c.l.bf16 %v559
        %v562 = vunpack.c.h.bf16 %v559
        %v563 = vunpack.c.l.bf16 %v560
        %v564 = vunpack.c.h.bf16 %v560
        %v565 = vld [vmem:[%s500] sm:$0x77]
        %v566 = vld [vmem:[%s500 + $0x8] sm:$0x77]
        %v567 = vunpack.c.l.bf16 %v565
        %v568 = vunpack.c.h.bf16 %v565
        %v569 = vunpack.c.l.bf16 %v566
        %v570 = vunpack.c.h.bf16 %v566
        %v571 = vsub.f32 %v561, %v567
        %v572 = vsub.f32 %v562, %v568
        %v573 = vsub.f32 %v563, %v569
        %v574 = vsub.f32 %v564, %v570
        %v575 = vmul.f32 %v571, %v571
        %v576 = vmul.f32 %v572, %v572
        %v577 = vmul.f32 %v573, %v573
        %v578 = vmul.f32 %v574, %v574
        %vm579 = vcmask 1045504
        %v580 = vsel %vm579, %v575, 0.0
        %v581 = vrot.slane %v580, 4
        %v582 = vadd.f32 %v580, %v581
        %v583 = vrot.slane %v582, 2
        %v584 = vadd.f32 %v582, %v583
        %v585 = vrot.slane %v584, 1
        %v586 = vadd.f32 %v584, %v585
        %v587 = vsel %vm579, %v576, 0.0
        %v588 = vrot.slane %v587, 4
        %v589 = vadd.f32 %v587, %v588
        %v590 = vrot.slane %v589, 2
        %v591 = vadd.f32 %v589, %v590
        %v592 = vrot.slane %v591, 1
        %v593 = vadd.f32 %v591, %v592
        %v594 = vsel %vm579, %v577, 0.0
        %v595 = vrot.slane %v594, 4
        %v596 = vadd.f32 %v594, %v595
        %v597 = vrot.slane %v596, 2
        %v598 = vadd.f32 %v596, %v597
        %v599 = vrot.slane %v598, 1
        %v600 = vadd.f32 %v598, %v599
        %v601 = vsel %vm579, %v578, 0.0
        %v602 = vrot.slane %v601, 4
        %v603 = vadd.f32 %v601, %v602
        %v604 = vrot.slane %v603, 2
        %v605 = vadd.f32 %v603, %v604
        %v606 = vrot.slane %v605, 1
        %v607 = vadd.f32 %v605, %v606
        %s608 = sld [smem:[#allocation2]]
        %v610 = vperm.slane %v557, 0
        %v611 = vperm.slane %v557, 1
        %v612 = vperm.slane %v557, 2
        %v613 = vperm.slane %v557, 3
        %v618 = vmul.f32 %v586, %v610
        %v619 = vmul.f32 %v593, %v611
        %v620 = vmul.f32 %v600, %v612
        %v621 = vmul.f32 %v607, %v613
        %vm622 = vcmask 1040384
        %v623 = vsel %vm622, %v618, 0.0
        %v624 = vsel %vm622, %v619, 0.0
        %v625 = vadd.f32 %v623, %v624
        %v626 = vsel %vm622, %v620, 0.0
        %v627 = vadd.f32 %v625, %v626
        %v628 = vsel %vm622, %v621, 0.0
        %v629 = vadd.f32 %v627, %v628
        %630 = vadd.xlane.f32.xlu0 %v629
        %v631 = vpop.xlane.xlu0 %630
        %v632 = vrot.slane %v631, 4
        %v633 = vadd.f32 %v631, %v632
        %v634 = vrot.slane %v633, 2
        %v635 = vadd.f32 %v633, %v634
        %v636 = vrot.slane %v635, 1
        %v637 = vadd.f32 %v635, %v636
        %s638 = vtos %v637
        %s639 = sadd.f32 %s608, %s638
        %s640 = scalar_lea.smem [#allocation2], 0
        %641 = sst [smem:[%s640]] %s639
        %s642 = sld [smem:[#allocation2 + $0x1]]
        %v644 = vperm.slane %v558, 0
        %v645 = vperm.slane %v558, 1
        %v646 = vperm.slane %v558, 2
        %v647 = vperm.slane %v558, 3
        %v652 = vmul.f32 %v586, %v644
        %v653 = vmul.f32 %v593, %v645
        %v654 = vmul.f32 %v600, %v646
        %v655 = vmul.f32 %v607, %v647
        %v656 = vsel %vm622, %v652, 0.0
        %v657 = vsel %vm622, %v653, 0.0
        %v658 = vadd.f32 %v656, %v657
        %v659 = vsel %vm622, %v654, 0.0
        %v660 = vadd.f32 %v658, %v659
        %v661 = vsel %vm622, %v655, 0.0
        %v662 = vadd.f32 %v660, %v661
        %663 = vadd.xlane.f32.xlu0 %v662
        %v664 = vpop.xlane.xlu0 %663
        %v665 = vrot.slane %v664, 4
        %v666 = vadd.f32 %v664, %v665
        %v667 = vrot.slane %v666, 2
        %v668 = vadd.f32 %v666, %v667
        %v669 = vrot.slane %v668, 1
        %v670 = vadd.f32 %v668, %v669
        %s671 = vtos %v670
        %s672 = sadd.f32 %s642, %s671
        %s673 = scalar_lea.smem [#allocation2], 1
        %674 = sst [smem:[%s673]] %s672
        %s675 = sld [smem:[#allocation2 + $0x2]]
        %v676 = vsel %vm622, %v610, 0.0
        %v677 = vsel %vm622, %v611, 0.0
        %v678 = vadd.f32 %v676, %v677
        %v679 = vsel %vm622, %v612, 0.0
        %v680 = vadd.f32 %v678, %v679
        %v681 = vsel %vm622, %v613, 0.0
        %v682 = vadd.f32 %v680, %v681
        %683 = vadd.xlane.f32.xlu0 %v682
        %v684 = vpop.xlane.xlu0 %683
        %v685 = vrot.slane %v684, 4
        %v686 = vadd.f32 %v684, %v685
        %v687 = vrot.slane %v686, 2
        %v688 = vadd.f32 %v686, %v687
        %v689 = vrot.slane %v688, 1
        %v690 = vadd.f32 %v688, %v689
        %s691 = vtos %v690
        %s692 = sadd.f32 %s675, %s691
        %s693 = scalar_lea.smem [#allocation2], 2
        %694 = sst [smem:[%s693]] %s692
        %s695 = sld [smem:[#allocation2 + $0x3]]
        %v696 = vsel %vm622, %v644, 0.0
        %v697 = vsel %vm622, %v645, 0.0
        %v698 = vadd.f32 %v696, %v697
        %v699 = vsel %vm622, %v646, 0.0
        %v700 = vadd.f32 %v698, %v699
        %v701 = vsel %vm622, %v647, 0.0
        %v702 = vadd.f32 %v700, %v701
        %703 = vadd.xlane.f32.xlu0 %v702
        %v704 = vpop.xlane.xlu0 %703
        %v705 = vrot.slane %v704, 4
        %v706 = vadd.f32 %v704, %v705
        %v707 = vrot.slane %v706, 2
        %v708 = vadd.f32 %v706, %v707
        %v709 = vrot.slane %v708, 1
        %v710 = vadd.f32 %v708, %v709
        %s711 = vtos %v710
        %s712 = sadd.f32 %s695, %s711
        %s713 = scalar_lea.smem [#allocation2], 3
        %714 = sst [smem:[%s713]] %s712
        %v715 = vld [vmem:[%s417] sm:$0xff]
        %v716 = vld [vmem:[%s417 + $0x8] sm:$0xff]
        %v717 = vld [vmem:[%s417 + $0x10] sm:$0x33]
        %v718 = vld [vmem:[%s417 + $0x18] sm:$0x33]
        %v719 = vunpack.c.l.bf16 %v715
        %v720 = vunpack.c.h.bf16 %v715
        %v721 = vunpack.c.l.bf16 %v716
        %v722 = vunpack.c.h.bf16 %v716
        %v723 = vunpack.c.l.bf16 %v717
        %v724 = vunpack.c.h.bf16 %v717
        %v725 = vunpack.c.l.bf16 %v718
        %v726 = vunpack.c.h.bf16 %v718
        %727 = vrot.lane.b32.xlu0 %v719, 1
        %v728 = vpop.permute.xlu0 %727
        %729 = vrot.lane.b32.xlu0 %v723, 1
        %v730 = vpop.permute.xlu0 %729
        %731 = vrot.lane.b32.xlu0 %v720, 1
        %v732 = vpop.permute.xlu0 %731
        %733 = vrot.lane.b32.xlu0 %v724, 1
        %v734 = vpop.permute.xlu0 %733
        %735 = vrot.lane.b32.xlu0 %v721, 1
        %v736 = vpop.permute.xlu0 %735
        %737 = vrot.lane.b32.xlu0 %v725, 1
        %v738 = vpop.permute.xlu0 %737
        %739 = vrot.lane.b32.xlu0 %v722, 1
        %v740 = vpop.permute.xlu0 %739
        %741 = vrot.lane.b32.xlu0 %v726, 1
        %v742 = vpop.permute.xlu0 %741
        %v743 = vlaneseq
        %v744 = vand.u32 %v743, 127
        %vm745 = vcmp.lt.s32.totalorder %v744, 1
        %v746 = vsel %vm745, %v736, %v740
        %v747 = vsel %vm745, %v738, %v742
        %v748 = vsel %vm745, %v732, %v736
        %v749 = vsel %vm745, %v734, %v738
        %v750 = vsel %vm745, %v728, %v732
        %v751 = vsel %vm745, %v730, %v734
        %v752 = vsel %vm745, %v740, %v728
        %v753 = vsel %vm745, %v742, %v730
        %v754 = vsub.f32 %v719, %v752
        %v755 = vsub.f32 %v720, %v750
        %v756 = vsub.f32 %v721, %v748
        %v757 = vsub.f32 %v722, %v746
        %v758 = vsub.f32 %v723, %v753
        %v759 = vsub.f32 %v724, %v751
        %v760 = vsub.f32 %v725, %v749
        %v761 = vsub.f32 %v726, %v747
        %s762 = sld [smem:[#allocation2 + $0x4]]
        %v763 = vmul.f32 %v754, %v754
        %v764 = vmul.f32 %v755, %v755
        %v765 = vmul.f32 %v756, %v756
        %v766 = vmul.f32 %v757, %v757
        %v767 = vmul.f32 %v758, %v758
        %v768 = vmul.f32 %v759, %v759
        %v769 = vmul.f32 %v760, %v760
        %v770 = vmul.f32 %v761, %v761
        %v771 = vadd.f32 %v763, %v764
        %v772 = vadd.f32 %v771, %v765
        %v773 = vadd.f32 %v772, %v766
        %vm774 = vcmask 1043456
        %v775 = vsel %vm774, %v767, 0.0
        %v776 = vadd.f32 %v773, %v775
        %v777 = vsel %vm774, %v768, 0.0
        %v778 = vadd.f32 %v776, %v777
        %v779 = vsel %vm774, %v769, 0.0
        %v780 = vadd.f32 %v778, %v779
        %v781 = vsel %vm774, %v770, 0.0
        %v782 = vadd.f32 %v780, %v781
        %783 = vadd.xlane.f32.xlu0 %v782
        %v784 = vpop.xlane.xlu0 %783
        %v785 = vrot.slane %v784, 4
        %v786 = vadd.f32 %v784, %v785
        %v787 = vrot.slane %v786, 2
        %v788 = vadd.f32 %v786, %v787
        %v789 = vrot.slane %v788, 1
        %v790 = vadd.f32 %v788, %v789
        %s791 = vtos %v790
        %s792 = sadd.f32 %s762, %s791
        %s793 = scalar_lea.smem [#allocation2], 4
        %794 = sst [smem:[%s793]] %s792
        %v795 = vld [vmem:[%s513] sm:$0xff]
        %v796 = vunpack.c.l.bf16 %v795
        %v797 = vunpack.c.h.bf16 %v795
        %v798 = vld [vmem:[%s519] sm:$0xff]
        %v799 = vunpack.c.l.bf16 %v798
        %v800 = vunpack.c.h.bf16 %v798
        %v801 = vmul.f32 %v796, %v799
        %v802 = vmul.f32 %v797, %v800
        %v805 = vrot.slane %v801, 5
        %v806 = vrot.slane %v805, 4
        %v807 = vrot.slane %v802, 5
        %v808 = vrot.slane %v807, 4
        %v811 = vadd.f32 %v801, %v806
        %v812 = vadd.f32 %v802, %v808
        %v813 = vrot.slane %v801, 6
        %v814 = vrot.slane %v813, 4
        %v815 = vrot.slane %v802, 6
        %v816 = vrot.slane %v815, 4
        %v819 = vadd.f32 %v811, %v814
        %v820 = vadd.f32 %v812, %v816
        %s821 = sld [smem:[#allocation2 + $0x5]]
        %v822 = vsub.f32 1.0, %v819
        %v823 = vsub.f32 1.0, %v820
        %v825 = vunpack.c.l.s4 286326784
        %v826 = vunpack.c.0.s8 %v825
        %v827 = vperm.slane %v557, %v826
        %v829 = vunpack.c.l.s4 858989090
        %v830 = vunpack.c.0.s8 %v829
        %v831 = vperm.slane %v557, %v830
        %v834 = vmul.f32 %v822, %v827
        %v835 = vmul.f32 %v823, %v831
        %v838 = vperm.slane %v834, 0
        %v839 = vperm.slane %v834, 4
        %v840 = vperm.slane %v835, 0
        %v841 = vperm.slane %v835, 4
        %v846 = vsel %vm622, %v838, 0.0
        %v847 = vsel %vm622, %v839, 0.0
        %v848 = vadd.f32 %v846, %v847
        %v849 = vsel %vm622, %v840, 0.0
        %v850 = vadd.f32 %v848, %v849
        %v851 = vsel %vm622, %v841, 0.0
        %v852 = vadd.f32 %v850, %v851
        %853 = vadd.xlane.f32.xlu0 %v852
        %v854 = vpop.xlane.xlu0 %853
        %v855 = vrot.slane %v854, 4
        %v856 = vadd.f32 %v854, %v855
        %v857 = vrot.slane %v856, 2
        %v858 = vadd.f32 %v856, %v857
        %v859 = vrot.slane %v858, 1
        %v860 = vadd.f32 %v858, %v859
        %s861 = vtos %v860
        %s862 = sadd.f32 %s821, %s861
        %s863 = scalar_lea.smem [#allocation2], 5
        %864 = sst [smem:[%s863]] %s862
        %v865 = vld [vmem:[%s506] sm:$0xff]
        %v866 = vunpack.c.l.bf16 %v865
        %v867 = vunpack.c.h.bf16 %v865
        %870 = vst [vmem:[#allocation1] ss:$2 sm:$0xff] %v866
        %s871 = scalar_lea.vmem [#allocation1], 16
        %872 = vst [vmem:[%s871] ss:$2 sm:$0xff] %v867
        %v873 = vld.sshfl [vmem:[#allocation1] sm:$0xff pattern:$0x75316420]
        %v874 = vld.sshfl [vmem:[#allocation1 + $0x8] sm:$0xff pattern:$0x75316420]
        %v875 = vld.sshfl [vmem:[#allocation1 + $0x10] sm:$0xff pattern:$0x75316420]
        %v876 = vld.sshfl [vmem:[#allocation1 + $0x18] sm:$0xff pattern:$0x75316420]
        %881 = vrot.lane.b32.xlu0 %v873, 1
        %v882 = vpop.permute.xlu0 %881
        %883 = vrot.lane.b32.xlu0 %v874, 1
        %v884 = vpop.permute.xlu0 %883
        %885 = vrot.lane.b32.xlu0 %v875, 1
        %v886 = vpop.permute.xlu0 %885
        %887 = vrot.lane.b32.xlu0 %v876, 1
        %v888 = vpop.permute.xlu0 %887
        %v889 = vsel %vm745, %v886, %v888
        %v890 = vsel %vm745, %v884, %v886
        %v891 = vsel %vm745, %v882, %v884
        %v892 = vsel %vm745, %v888, %v882
        %v897 = vrot.slane %v891, 4
        %v898 = vrot.slane %v889, 4
        %v899 = vsel %vm774, %v892, %v897
        %v900 = vsel %vm774, %v890, %v898
        %v903 = vsub.f32 %v866, %v899
        %v904 = vsub.f32 %v867, %v900
        %v905 = vmul.f32 %v903, %v903
        %v906 = vmul.f32 %v904, %v904
        %v909 = vrot.slane %v905, 5
        %v910 = vrot.slane %v909, 4
        %v911 = vrot.slane %v906, 5
        %v912 = vrot.slane %v911, 4
        %v915 = vadd.f32 %v905, %v910
        %v916 = vadd.f32 %v906, %v912
        %v917 = vrot.slane %v905, 6
        %v918 = vrot.slane %v917, 4
        %v919 = vrot.slane %v906, 6
        %v920 = vrot.slane %v919, 4
        %v923 = vadd.f32 %v915, %v918
        %v924 = vadd.f32 %v916, %v920
        %v925 = vadd.f32 %v923, 1e-12
        %v926 = vadd.f32 %v924, 1e-12
        %v927 = vrsqrt.pop %v925
        %v928 = vmul.f32 %v927, %v925
        %v929 = vmul.f32 %v928, %v927
        %v930 = vmul.f32 0.5, %v929
        %v931 = vsub.f32 1.5, %v930
        %v932 = vmul.f32 %v927, %v931
        %v933 = vmul.f32 %v925, %v932
        %vm934 = vcmp.eq.f32.partialorder %v925, inf
        %v935 = vsel %vm934, %v925, %v933
        %vm936 = vcmp.eq.f32.partialorder %v925, 0.0
        %v937 = vand.u32 %v925, 2147483648
        %v938 = vsel %vm936, %v937, %v935
        %v939 = vrsqrt.pop %v926
        %v940 = vmul.f32 %v939, %v926
        %v941 = vmul.f32 %v940, %v939
        %v942 = vmul.f32 0.5, %v941
        %v943 = vsub.f32 1.5, %v942
        %v944 = vmul.f32 %v939, %v943
        %v945 = vmul.f32 %v926, %v944
        %vm946 = vcmp.eq.f32.partialorder %v926, inf
        %v947 = vsel %vm946, %v926, %v945
        %vm948 = vcmp.eq.f32.partialorder %v926, 0.0
        %v949 = vand.u32 %v926, 2147483648
        %v950 = vsel %vm948, %v949, %v947
        %951 = vrot.lane.b32.xlu0 %v561, 1
        %v952 = vpop.permute.xlu0 %951
        %953 = vrot.lane.b32.xlu0 %v562, 1
        %v954 = vpop.permute.xlu0 %953
        %955 = vrot.lane.b32.xlu0 %v563, 1
        %v956 = vpop.permute.xlu0 %955
        %957 = vrot.lane.b32.xlu0 %v564, 1
        %v958 = vpop.permute.xlu0 %957
        %v959 = vsel %vm745, %v956, %v958
        %v960 = vsel %vm745, %v954, %v956
        %v961 = vsel %vm745, %v952, %v954
        %v962 = vsel %vm745, %v958, %v952
        %v963 = vsub.f32 %v561, %v962
        %v964 = vsub.f32 %v562, %v961
        %v965 = vsub.f32 %v563, %v960
        %v966 = vsub.f32 %v564, %v959
        %v967 = vmul.f32 %v963, %v963
        %v968 = vmul.f32 %v964, %v964
        %v969 = vmul.f32 %v965, %v965
        %v970 = vmul.f32 %v966, %v966
        %v975 = vrot.slane %v967, 1
        %v976 = vrot.slane %v968, 1
        %v977 = vrot.slane %v969, 1
        %v978 = vrot.slane %v970, 1
        %v983 = vadd.f32 %v967, %v975
        %v984 = vadd.f32 %v968, %v976
        %v985 = vadd.f32 %v969, %v977
        %v986 = vadd.f32 %v970, %v978
        %v987 = vrot.slane %v967, 2
        %v988 = vrot.slane %v968, 2
        %v989 = vrot.slane %v969, 2
        %v990 = vrot.slane %v970, 2
        %v995 = vadd.f32 %v983, %v987
        %v996 = vadd.f32 %v984, %v988
        %v997 = vadd.f32 %v985, %v989
        %v998 = vadd.f32 %v986, %v990
        %v999 = vadd.f32 %v995, 1e-12
        %v1000 = vadd.f32 %v996, 1e-12
        %v1001 = vadd.f32 %v997, 1e-12
        %v1002 = vadd.f32 %v998, 1e-12
        %v1003 = vrsqrt.pop %v999
        %v1004 = vmul.f32 %v1003, %v999
        %v1005 = vmul.f32 %v1004, %v1003
        %v1006 = vmul.f32 0.5, %v1005
        %v1007 = vsub.f32 1.5, %v1006
        %v1008 = vmul.f32 %v1003, %v1007
        %v1009 = vmul.f32 %v999, %v1008
        %vm1010 = vcmp.eq.f32.partialorder %v999, inf
        %v1011 = vsel %vm1010, %v999, %v1009
        %vm1012 = vcmp.eq.f32.partialorder %v999, 0.0
        %v1013 = vand.u32 %v999, 2147483648
        %v1014 = vsel %vm1012, %v1013, %v1011
        %v1015 = vrsqrt.pop %v1000
        %v1016 = vmul.f32 %v1015, %v1000
        %v1017 = vmul.f32 %v1016, %v1015
        %v1018 = vmul.f32 0.5, %v1017
        %v1019 = vsub.f32 1.5, %v1018
        %v1020 = vmul.f32 %v1015, %v1019
        %v1021 = vmul.f32 %v1000, %v1020
        %vm1022 = vcmp.eq.f32.partialorder %v1000, inf
        %v1023 = vsel %vm1022, %v1000, %v1021
        %vm1024 = vcmp.eq.f32.partialorder %v1000, 0.0
        %v1025 = vand.u32 %v1000, 2147483648
        %v1026 = vsel %vm1024, %v1025, %v1023
        %v1027 = vrsqrt.pop %v1001
        %v1028 = vmul.f32 %v1027, %v1001
        %v1029 = vmul.f32 %v1028, %v1027
        %v1030 = vmul.f32 0.5, %v1029
        %v1031 = vsub.f32 1.5, %v1030
        %v1032 = vmul.f32 %v1027, %v1031
        %v1033 = vmul.f32 %v1001, %v1032
        %vm1034 = vcmp.eq.f32.partialorder %v1001, inf
        %v1035 = vsel %vm1034, %v1001, %v1033
        %vm1036 = vcmp.eq.f32.partialorder %v1001, 0.0
        %v1037 = vand.u32 %v1001, 2147483648
        %v1038 = vsel %vm1036, %v1037, %v1035
        %v1039 = vrsqrt.pop %v1002
        %v1040 = vmul.f32 %v1039, %v1002
        %v1041 = vmul.f32 %v1040, %v1039
        %v1042 = vmul.f32 0.5, %v1041
        %v1043 = vsub.f32 1.5, %v1042
        %v1044 = vmul.f32 %v1039, %v1043
        %v1045 = vmul.f32 %v1002, %v1044
        %vm1046 = vcmp.eq.f32.partialorder %v1002, inf
        %v1047 = vsel %vm1046, %v1002, %v1045
        %vm1048 = vcmp.eq.f32.partialorder %v1002, 0.0
        %v1049 = vand.u32 %v1002, 2147483648
        %v1050 = vsel %vm1048, %v1049, %v1047
        %v1053 = vperm.slane %v938, 0
        %v1054 = vperm.slane %v938, 4
        %v1055 = vperm.slane %v950, 0
        %v1056 = vperm.slane %v950, 4
        %v1061 = vsub.f32 %v1014, %v1053
        %v1062 = vsub.f32 %v1026, %v1054
        %v1063 = vsub.f32 %v1038, %v1055
        %v1064 = vsub.f32 %v1050, %v1056
        %v1065 = vmul.f32 %v1061, %v1061
        %v1066 = vmul.f32 %v1062, %v1062
        %v1067 = vmul.f32 %v1063, %v1063
        %v1068 = vmul.f32 %v1064, %v1064
        %v1069 = vsel %vm622, %v1065, 0.0
        %v1070 = vsel %vm622, %v1066, 0.0
        %v1071 = vadd.f32 %v1069, %v1070
        %v1072 = vsel %vm622, %v1067, 0.0
        %v1073 = vadd.f32 %v1071, %v1072
        %v1074 = vsel %vm622, %v1068, 0.0
        %v1075 = vadd.f32 %v1073, %v1074
        %1076 = vadd.xlane.f32.xlu0 %v1075
        %v1077 = vpop.xlane.xlu0 %1076
        %v1078 = vrot.slane %v1077, 4
        %v1079 = vadd.f32 %v1077, %v1078
        %v1080 = vrot.slane %v1079, 2
        %v1081 = vadd.f32 %v1079, %v1080
        %v1082 = vrot.slane %v1081, 1
        %v1083 = vadd.f32 %v1081, %v1082
        %s1084 = vtos %v1083
        %s1085 = sadd.f32 %s1084, 0.0
        %v1090 = vrot.slane %v1065, 3
        %v1091 = vrot.slane %v1066, 3
        %v1092 = vrot.slane %v1067, 3
        %v1093 = vrot.slane %v1068, 3
        %v1098 = vsel %vm622, %v1090, 0.0
        %v1099 = vsel %vm622, %v1091, 0.0
        %v1100 = vadd.f32 %v1098, %v1099
        %v1101 = vsel %vm622, %v1092, 0.0
        %v1102 = vadd.f32 %v1100, %v1101
        %v1103 = vsel %vm622, %v1093, 0.0
        %v1104 = vadd.f32 %v1102, %v1103
        %1105 = vadd.xlane.f32.xlu0 %v1104
        %v1106 = vpop.xlane.xlu0 %1105
        %v1107 = vrot.slane %v1106, 4
        %v1108 = vadd.f32 %v1106, %v1107
        %v1109 = vrot.slane %v1108, 2
        %v1110 = vadd.f32 %v1108, %v1109
        %v1111 = vrot.slane %v1110, 1
        %v1112 = vadd.f32 %v1110, %v1111
        %s1113 = vtos %v1112
        %s1114 = sadd.f32 %s1085, %s1113
        %s1115 = sld [smem:[#allocation2 + $0x6]]
        %s1116 = sadd.f32 %s1115, %s1114
        %s1117 = scalar_lea.smem [#allocation2], 6
        %1118 = sst [smem:[%s1117]] %s1116
        %p1119 = scmp.eq.s32.totalorder %s22, 1
        // Predicated region
        $region88: #{combined_loss.1} parent=78 // pred_check
          %p1120 = pneg %p1119
        $region89: #{combined_loss.1} parent=78 // pred_check_branch
          %1122 = sbr.rel (%p1120) target = $region91
        $region90: #{combined_loss.1} parent=78 // pred_region
          %s1123 = sld [smem:[#allocation2 + $0x2]]
          %s1124 = smax.f32 %s1123, 1.0
          %s1125 = sld [smem:[#allocation2 + $0x3]]
          %s1126 = smax.f32 %s1125, 1.0
          %v1127 = vld [vmem:[%s8] sm:$0x7]
          %v1128 = vunpack.c.l.bf16 %v1127
          %v1129 = vld [vmem:[%s9] sm:$0x7]
          %v1130 = vunpack.c.l.bf16 %v1129
          %v1131 = vsub.f32 %v1128, %v1130
          %s1132 = sld [smem:[#allocation2]]
          %s1133 = smul.f32 %s1124, 6.0
          %v1134 = vstv %s1133
          %v1135 = vrcp.pop %v1134
          %v1136 = vmul.f32 %v1134, %v1135
          %v1137 = vsub.f32 1.0, %v1136
          %v1138 = vmul.f32 %v1135, %v1137
          %v1139 = vadd.f32 %v1135, %v1138
          %vm1140 = vweird.f32 %v1134
          %vm1141 = vweird.f32 %v1135
          %vm1142 = vmor %vm1140, %vm1141
          %v1143 = vsel %vm1142, %v1135, %v1139
          %v1144 = vand.u32 2147483647, %v1134
          %vm1145 = vcmp.eq.f32.partialorder %v1144, 8.507059e+37
          %v1146 = vand.u32 %v1134, 2147483648
          %v1147 = vor.u32 1.1754944e-38, %v1146
          %v1148 = vsel %vm1145, %v1147, %v1143
          %s1149 = vtos %v1148
          %s1150 = smul.f32 %s1132, %s1149
          %s1151 = scalar_lea.smem [#allocation4], 0
          %1152 = sst [smem:[%s1151]] %s1150
          %s1153 = sld [smem:[#allocation2 + $0x1]]
          %s1154 = smul.f32 %s1126, 6.0
          %v1155 = vstv %s1154
          %v1156 = vrcp.pop %v1155
          %v1157 = vmul.f32 %v1155, %v1156
          %v1158 = vsub.f32 1.0, %v1157
          %v1159 = vmul.f32 %v1156, %v1158
          %v1160 = vadd.f32 %v1156, %v1159
          %vm1161 = vweird.f32 %v1155
          %vm1162 = vweird.f32 %v1156
          %vm1163 = vmor %vm1161, %vm1162
          %v1164 = vsel %vm1163, %v1156, %v1160
          %v1165 = vand.u32 2147483647, %v1155
          %vm1166 = vcmp.eq.f32.partialorder %v1165, 8.507059e+37
          %v1167 = vand.u32 %v1155, 2147483648
          %v1168 = vor.u32 1.1754944e-38, %v1167
          %v1169 = vsel %vm1166, %v1168, %v1164
          %s1170 = vtos %v1169
          %s1171 = smul.f32 %s1153, %s1170
          %s1172 = scalar_lea.smem [#allocation4], 1
          %1173 = sst [smem:[%s1172]] %s1171
          %s1174 = sld [smem:[#allocation2 + $0x4]]
          %v1175 = vrcp.pop 12288.0
          %v1176 = vmul.f32 12288.0, %v1175
          %v1177 = vsub.f32 1.0, %v1176
          %v1178 = vmul.f32 %v1175, %v1177
          %v1179 = vadd.f32 %v1175, %v1178
          %vm1180 = vweird.f32 %v1175
          %v1181 = vsel %vm1180, %v1175, %v1179
          %s1182 = vtos %v1181
          %s1183 = smul.f32 %s1174, %s1182
          %s1184 = scalar_lea.smem [#allocation4], 2
          %1185 = sst [smem:[%s1184]] %s1183
          %v1186 = vmul.f32 %v1131, %v1131
          %vm1187 = vcmask 62464
          %v1188 = vsel %vm1187, %v1186, 0.0
          %1189 = vadd.xlane.f32.xlu0 %v1188
          %v1190 = vpop.xlane.xlu0 %1189
          %v1191 = vrot.slane %v1190, 4
          %v1192 = vadd.f32 %v1190, %v1191
          %v1193 = vrot.slane %v1192, 2
          %v1194 = vadd.f32 %v1192, %v1193
          %v1195 = vrot.slane %v1194, 1
          %v1196 = vadd.f32 %v1194, %v1195
          %s1197 = vtos %v1196
          %v1198 = vrcp.pop 48.0
          %v1199 = vmul.f32 48.0, %v1198
          %v1200 = vsub.f32 1.0, %v1199
          %v1201 = vmul.f32 %v1198, %v1200
          %v1202 = vadd.f32 %v1198, %v1201
          %vm1203 = vweird.f32 %v1198
          %v1204 = vsel %vm1203, %v1198, %v1202
          %s1205 = vtos %v1204
          %s1206 = smul.f32 %s1197, %s1205
          %s1207 = scalar_lea.smem [#allocation4], 3
          %1208 = sst [smem:[%s1207]] %s1206
          %s1209 = sld [smem:[#allocation2 + $0x5]]
          %v1210 = vstv %s1124
          %v1211 = vrcp.pop %v1210
          %v1212 = vmul.f32 %v1210, %v1211
          %v1213 = vsub.f32 1.0, %v1212
          %v1214 = vmul.f32 %v1211, %v1213
          %v1215 = vadd.f32 %v1211, %v1214
          %vm1216 = vweird.f32 %v1210
          %vm1217 = vweird.f32 %v1211
          %vm1218 = vmor %vm1216, %vm1217
          %v1219 = vsel %vm1218, %v1211, %v1215
          %v1220 = vand.u32 2147483647, %v1210
          %vm1221 = vcmp.eq.f32.partialorder %v1220, 8.507059e+37
          %v1222 = vand.u32 %v1210, 2147483648
          %v1223 = vor.u32 1.1754944e-38, %v1222
          %v1224 = vsel %vm1221, %v1223, %v1219
          %s1225 = vtos %v1224
          %s1226 = smul.f32 %s1209, %s1225
          %s1227 = scalar_lea.smem [#allocation4], 4
          %1228 = sst [smem:[%s1227]] %s1226
          %s1229 = sld [smem:[#allocation2 + $0x6]]
          %v1230 = vrcp.pop 2048.0
          %v1231 = vmul.f32 2048.0, %v1230
          %v1232 = vsub.f32 1.0, %v1231
          %v1233 = vmul.f32 %v1230, %v1232
          %v1234 = vadd.f32 %v1230, %v1233
          %vm1235 = vweird.f32 %v1230
          %v1236 = vsel %vm1235, %v1230, %v1234
          %s1237 = vtos %v1236
          %s1238 = smul.f32 %s1229, %s1237
          %s1239 = scalar_lea.smem [#allocation4], 5
          %1240 = sst [smem:[%s1239]] %s1238
        $region91: #{combined_loss.1} parent=78 // pred_fallthru
          _
        // Predicated region
        $region92: #{combined_loss.1} parent=78 // pred_check
          %p1241 = pneg %p285
        $region93: #{combined_loss.1} parent=78 // pred_check_branch
          %1243 = sbr.rel (%p1241) target = $region95
        $region94: #{combined_loss.1} parent=78 // pred_region
          %1245 = vsyncadd [#allocation5], 0
          %s1247 = sshll.u32 %s10, 4
          %s1248 = int_to_ptr.vmem [resolvable:$true] %s1247
          %1250 = dma.smem_to_vmem [#allocation4], 16, %s1248, [#allocation5]
        $region95: #{combined_loss.1} parent=78 // pred_fallthru
          _
        // Predicated region
        $region96: #{combined_loss.1} parent=78 // pred_check
          %p1251 = pneg %p285
        $region97: #{combined_loss.1} parent=78 // pred_check_branch
          %1253 = sbr.rel (%p1251) target = $region99
        $region98: #{combined_loss.1} parent=78 // pred_region
          %1255 = dma.done [#allocation5], 16
        $region99: #{combined_loss.1} parent=78 // pred_fallthru
          _
        %1256 = sfence
      $region79: #{combined_loss.1} parent=5 // pred_fallthru
        _
      %p1257 = scmp.le.s32.totalorder 2, %s17
      // Predicated region
      $region100: #{combined_loss.1} parent=5 // pred_check
        %p1258 = pneg %p1257
      $region101: #{combined_loss.1} parent=5 // pred_check_branch
        %1260 = sbr.rel (%p1258) target = $region103
      $region102: #{combined_loss.1} parent=5 // pred_region
        %s1261 = ssub.s32 %s17, 2
      $region103: #{combined_loss.1} parent=5 // pred_fallthru
        _
    $region6: #{combined_loss.1} parent=1 // loop_footer
      %s21 = sadd.s32 1, %s17
    $region7: #{combined_loss.1} parent=1 // loop_footer_branch
      %16 = sbr.rel target = $region3
    $region8: #{combined_loss.1} parent=1 // loop_exit
      _
    %1262 = vsyncpa [#allocation5], 1
    %s1263 = scalar_lea.sflag [#allocation5], 1
    %1264 = vsyncpa %s1263, 1

</llo_original>
